<compile_context>
chip_gen: v7x
topology: tpu7x:2x2x1
jax: 0.10.0
libtpu: 0.0.40
codegen_flags: <defaults>
</compile_context>

<pallas_src>
import functools

import jax
import jax.numpy as jnp
from jax.experimental import pallas as pl
from jax.experimental.pallas import tpu as pltpu


# ----------------------------------------------------------------------------
# helpers
# ----------------------------------------------------------------------------
def _tile(dim, target, align):
    """Largest aligned divisor of `dim` <= target; else full dim (always legal).

    The token (row) dimension is padded to a multiple of 256 in
    robust_block_forward, so the full-extent fallback is only hit for output
    column counts that are not multiples of 128 (where it is the only legal
    block anyway)."""
    if dim <= target:
        return dim
    for t in range(target, align - 1, -1):
        if dim % t == 0 and t % align == 0:
            return t
    return dim


def _vmem_limit(est_bytes):
    """Explicit scoped-VMEM budget: leave the default for small kernels, raise
    it (capped below v7x's 64 MiB physical VMEM) when the estimated live set
    outgrows the default scoped limit."""
    if est_bytes <= 24 * 1024 * 1024:
        return None
    return min(int(est_bytes * 1.25) + (2 << 20), 60 * 1024 * 1024)


def _dot_nt(a, b):
    """a @ b.T contracting the last axes (no materialized transpose), f32 acc."""
    return jax.lax.dot_general(
        a, b, (((1,), (1,)), ((), ())), preferred_element_type=jnp.float32)


# ----------------------------------------------------------------------------
# Fused LayerNorm + matmul (+ optional bias / exact GELU) — bf16 MXU, f32 acc.
# LayerNorm is computed once per row tile into a VMEM scratch (j == 0) and
# reused across all output-column tiles.
# ----------------------------------------------------------------------------
def _ln_matmul_kernel(x_ref, g_ref, beta_ref, w_ref, *rest, eps, activation,
                      has_bias):
    if has_bias:
        bias_ref, o_ref, y_ref = rest
    else:
        o_ref, y_ref = rest

    @pl.when(pl.program_id(1) == 0)
    def _():
        x = x_ref[...].astype(jnp.float32)
        mean = jnp.mean(x, axis=-1, keepdims=True)
        xc = x - mean
        var = jnp.mean(xc * xc, axis=-1, keepdims=True)
        y = xc * jax.lax.rsqrt(var + eps)
        y = y * g_ref[...] + beta_ref[...]
        y_ref[...] = y.astype(jnp.bfloat16)

    acc = jnp.dot(y_ref[...], w_ref[...], preferred_element_type=jnp.float32)
    if has_bias:
        acc = acc + bias_ref[...].astype(jnp.float32)
    if activation == "gelu":
        # exact (erf-based) GELU, matching torch.nn.GELU default
        acc = 0.5 * acc * (1.0 + jax.lax.erf(acc * 0.7071067811865476))
    o_ref[...] = acc.astype(o_ref.dtype)


def ln_matmul(x, gamma, beta, w, bias=None, activation=None, out_dtype=None,
              eps=1e-5, tm=256, tn=256):
    M, K = x.shape
    N = w.shape[1]
    tm = _tile(M, tm, 8)
    tn = _tile(N, tn, 128)
    out_dtype = out_dtype or x.dtype
    has_bias = bias is not None

    in_specs = [
        pl.BlockSpec((tm, K), lambda i, j: (i, 0)),
        pl.BlockSpec((1, K), lambda i, j: (0, 0)),
        pl.BlockSpec((1, K), lambda i, j: (0, 0)),
        pl.BlockSpec((K, tn), lambda i, j: (0, j)),
    ]
    # weights are stored in bf16 already; astype is a no-op then
    args = [x, gamma.reshape(1, K), beta.reshape(1, K), w.astype(jnp.bfloat16)]
    if has_bias:
        in_specs.append(pl.BlockSpec((1, tn), lambda i, j: (0, j)))
        args.append(bias.reshape(1, N))

    est = (2 * tm * K * x.dtype.itemsize + tm * K * 2 + 2 * K * tn * 2
           + 2 * tm * tn * jnp.dtype(out_dtype).itemsize + 4 * K * 4
           + 2 * tn * 4)
    return pl.pallas_call(
        functools.partial(_ln_matmul_kernel, eps=eps, activation=activation,
                          has_bias=has_bias),
        out_shape=jax.ShapeDtypeStruct((M, N), out_dtype),
        grid=(M // tm, N // tn),
        in_specs=in_specs,
        out_specs=pl.BlockSpec((tm, tn), lambda i, j: (i, j)),
        scratch_shapes=[pltpu.VMEM((tm, K), jnp.bfloat16)],
        compiler_params=pltpu.CompilerParams(
            # j (output-column) axis reuses the per-row-tile LN scratch
            dimension_semantics=("parallel", "arbitrary"),
            vmem_limit_bytes=_vmem_limit(est)),
    )(*args)


# ----------------------------------------------------------------------------
# K-tiled matmul + bias + residual add — bf16 MXU, f32 accumulator scratch
# ----------------------------------------------------------------------------
def _matmul_resid_kernel(x_ref, w_ref, b_ref, r_ref, o_ref, acc_ref):
    k = pl.program_id(2)

    @pl.when(k == 0)
    def _():
        acc_ref[...] = jnp.zeros_like(acc_ref)

    acc_ref[...] += jnp.dot(x_ref[...].astype(jnp.bfloat16), w_ref[...],
                            preferred_element_type=jnp.float32)

    @pl.when(k == pl.num_programs(2) - 1)
    def _():
        o_ref[...] = (acc_ref[...] + b_ref[...].astype(jnp.float32)
                      + r_ref[...].astype(jnp.float32)).astype(o_ref.dtype)


def matmul_residual(x, w, bias, res, tm=256, tn=256, tk=512):
    M, K = x.shape
    N = w.shape[1]
    tm = _tile(M, tm, 8)
    tn = _tile(N, tn, 128)
    tk = _tile(K, tk, 128)
    return pl.pallas_call(
        _matmul_resid_kernel,
        out_shape=jax.ShapeDtypeStruct((M, N), res.dtype),
        grid=(M // tm, N // tn, K // tk),
        in_specs=[
            pl.BlockSpec((tm, tk), lambda i, j, k: (i, k)),
            pl.BlockSpec((tk, tn), lambda i, j, k: (k, j)),
            pl.BlockSpec((1, tn), lambda i, j, k: (0, j)),
            pl.BlockSpec((tm, tn), lambda i, j, k: (i, j)),
        ],
        out_specs=pl.BlockSpec((tm, tn), lambda i, j, k: (i, j)),
        scratch_shapes=[pltpu.VMEM((tm, tn), jnp.float32)],
        compiler_params=pltpu.CompilerParams(
            dimension_semantics=("parallel", "parallel", "arbitrary")),
    )(x, w.astype(jnp.bfloat16), bias.reshape(1, N), res)


# ----------------------------------------------------------------------------
# Robust attention core — one (batch, head) pair per grid step.
#
#   k  <- L2-normalize(k)
#   rbf_k [i,j] = exp(-scale * ||k_i - k_j||^2)           (= 2 - 2 k_i.k_j)
#   rbf_kv[i,j] = rbf_k[i,j] * exp(-scale * ||v_i - v_j||^2)
#   per-key log-weights w = log(robust(sqrt(1 + m1 + m2))) - logsumexp(.)
#       with m1[j] = (1/N) sum_l rbf[j,l],  m2 = (1/N) sum_j m1[j]
#   s[i,j] = -scale * ||q_i - k_j||^2
#   attn[i,j] = exp(kv_w[j] + s[i,j] - logsumexp_j(k_w[j] + s[i,j]))
#   out = attn @ v
# ----------------------------------------------------------------------------
def _robust_attn_kernel(qkv_ref, o_ref, *, head_dim, scale, h_a, loss_type,
                        q_tile):
    N = qkv_ref.shape[0]
    Dh = head_dim
    inv_n = 1.0 / N

    allkv = qkv_ref[...]                                    # (N, 3*Dh) bf16
    k32 = allkv[:, Dh:2 * Dh].astype(jnp.float32)
    v32 = allkv[:, 2 * Dh:3 * Dh].astype(jnp.float32)

    # F.normalize(k, dim=-1) via one rsqrt per key row (torch eps = 1e-12)
    k_sq = jnp.sum(k32 * k32, axis=-1, keepdims=True)
    kn32 = k32 * jax.lax.rsqrt(jnp.maximum(k_sq, 1e-24))
    kn = kn32.astype(jnp.bfloat16)                          # MXU operand
    v = v32.astype(jnp.bfloat16)                            # MXU operand

    # unit-norm keys:  ||kn_i - kn_j||^2 = 2 - 2 kn_i.kn_j
    kk = _dot_nt(kn, kn)                                    # (N, N), f32 acc
    dist_k = jnp.maximum(2.0 - 2.0 * kk, 0.0)
    rbf_k = jnp.exp(-scale * dist_k)

    vsq = v32 * v32
    v2_col = jnp.sum(vsq, axis=-1, keepdims=True)           # (N, 1)
    v2_row = _dot_nt(jnp.ones((1, Dh), jnp.float32), vsq)   # (1, N), tiny M=1
    vv = _dot_nt(v, v)                                      # (N, N)
    dist_v = jnp.maximum(v2_col + v2_row - 2.0 * vv, 0.0)
    rbf_kv = rbf_k * jnp.exp(-scale * dist_v)               # exp(-s*(dk+dv))

    def robust_log_weights(rbf):
        # rbf is symmetric, so reducing over axis 0 gives per-key sums as a
        # lane (row) vector directly — no skinny transpose.
        m1 = jnp.sum(rbf, axis=0, keepdims=True) * inv_n     # (1, N)
        m2 = jnp.sum(m1, axis=1, keepdims=True) * inv_n      # (1, 1)
        hn = jnp.sqrt(1.0 + m1 + m2)
        if loss_type == "huber":
            hr = jnp.where(hn <= h_a, 1.0, h_a / hn)
        else:  # 'hampel'
            h_b, h_c = 2.0 * h_a, 3.0 * h_a
            hr = jnp.where(hn < h_a, 1.0, hn)
            hr = jnp.where((hn >= h_a) & (hn < h_b), h_a / hr, hr)
            hr = jnp.where((hn >= h_b) & (hn < h_c),
                           h_a * (h_c - hr) / ((h_c - h_b) * hr), hr)
            hr = jnp.where(hn >= h_c, 0.01, hr)
        log_norm = jnp.log(hr)
        m = jnp.max(log_norm, axis=1, keepdims=True)
        lse = m + jnp.log(jnp.sum(jnp.exp(log_norm - m), axis=1, keepdims=True))
        return log_norm - lse                                 # (1, N)

    kv_w = robust_log_weights(rbf_kv)
    k_w = robust_log_weights(rbf_k)
    w_ratio = jnp.exp(kv_w - k_w)                             # (1, N), cheap

    def q_block(r0):
        rows = qkv_ref[pl.ds(r0, q_tile), :]                  # (tq, 3*Dh)
        q32 = rows[:, 0:Dh].astype(jnp.float32)
        q2 = jnp.sum(q32 * q32, axis=-1, keepdims=True)       # (tq, 1)
        qk = _dot_nt(q32.astype(jnp.bfloat16), kn)            # (tq, N)
        s = -scale * jnp.maximum(q2 + 1.0 - 2.0 * qk, 0.0)
        den = k_w + s
        m = jnp.max(den, axis=1, keepdims=True)
        p = jnp.exp(den - m)                                  # reused for attn
        se = jnp.sum(p, axis=1, keepdims=True)
        attn = p * w_ratio * pl.reciprocal(se, approx=True)
        out = jnp.dot(attn.astype(jnp.bfloat16), v,
                      preferred_element_type=jnp.float32)     # (tq, Dh)
        o_ref[pl.ds(r0, q_tile), :] = out.astype(o_ref.dtype)

    nq = N // q_tile
    if nq == 1:
        q_block(0)                                            # static fast path
    else:
        def body(t, carry):
            r0 = t * q_tile
            if q_tile % 8 == 0:
                r0 = pl.multiple_of(r0, 8)
            q_block(r0)
            return carry
        jax.lax.fori_loop(0, nq, body, 0)


def _q_tile(n):
    """Full N when small; else largest 8-aligned divisor of N <= 256."""
    if n <= 512:
        return n
    for t in range(256, 7, -8):
        if n % t == 0:
            return t
    return n


def robust_attention_core(qkv_heads, h_a, loss_type):
    """qkv_heads: (B, H, N, 3*Dh) bf16 -> (B, H, N, Dh) attention output."""
    B, H, N, D3 = qkv_heads.shape
    Dh = D3 // 3
    tq = _q_tile(N)
    # rough per-step live set: ~4 NxN f32 + a few (tq, N) f32 + vectors + blocks
    est = (4 * N * N * 4 + 4 * tq * N * 4 + 10 * N * Dh * 4
           + 4 * N * (3 * Dh + Dh) * qkv_heads.dtype.itemsize)
    return pl.pallas_call(
        functools.partial(_robust_attn_kernel, head_dim=Dh,
                          scale=Dh ** (-0.5), h_a=h_a, loss_type=loss_type,
                          q_tile=tq),
        out_shape=jax.ShapeDtypeStruct((B, H, N, Dh), qkv_heads.dtype),
        grid=(B, H),
        in_specs=[pl.BlockSpec((None, None, N, D3), lambda b, h: (b, h, 0, 0))],
        out_specs=pl.BlockSpec((None, None, N, Dh), lambda b, h: (b, h, 0, 0)),
        compiler_params=pltpu.CompilerParams(
            dimension_semantics=("parallel", "parallel"),
            vmem_limit_bytes=_vmem_limit(est)),
    )(qkv_heads)


# ----------------------------------------------------------------------------
# Parameters (deterministic synthetic init; shapes match the nn.Module __init__)
# ----------------------------------------------------------------------------
def init_params(key, dim, mlp_ratio=4.0):
    hidden = int(dim * mlp_ratio)
    ks = jax.random.split(key, 6)
    s = 0.02
    return {
        "ln1_g": jnp.ones((dim,), jnp.float32),
        "ln1_b": jnp.zeros((dim,), jnp.float32),
        # MXU weights stored in bf16 once (no per-forward f32->bf16 cast traffic)
        "qkv_w": (jax.random.normal(ks[0], (dim, 3 * dim), jnp.float32) * s
                  ).astype(jnp.bfloat16),
        # qkv_bias=False -> no qkv bias parameter at all
        "proj_w": (jax.random.normal(ks[1], (dim, dim), jnp.float32) * s
                   ).astype(jnp.bfloat16),
        "proj_b": jax.random.normal(ks[2], (dim,), jnp.float32) * s,
        "ln2_g": jnp.ones((dim,), jnp.float32),
        "ln2_b": jnp.zeros((dim,), jnp.float32),
        "fc1_w": (jax.random.normal(ks[3], (dim, hidden), jnp.float32) * s
                  ).astype(jnp.bfloat16),
        "fc1_b": jnp.zeros((hidden,), jnp.float32),
        "fc2_w": (jax.random.normal(ks[4], (hidden, dim), jnp.float32) * s
                  ).astype(jnp.bfloat16),
        "fc2_b": jax.random.normal(ks[5], (dim,), jnp.float32) * s,
    }


# ----------------------------------------------------------------------------
# RobustBlock.forward:
#   x = x + attn(norm1(x));  x = x + mlp(norm2(x))
# (LayerScale=Identity, DropPath=Identity, dropouts p=0)
# ----------------------------------------------------------------------------
def robust_block_forward(x, params, num_heads, h_a=0.2, loss_type="huber",
                         num_iter=1):
    if num_iter != 1:
        # TODO(synk): num_iter>1 weight-iteration path not implemented.
        raise NotImplementedError("only num_iter=1 (module default) supported")
    B, N, C = x.shape
    Dh = C // num_heads
    M = B * N
    xf = x.reshape(M, C)

    # Pad the token dim to a multiple of 256 (when large) so row tiles never
    # silently degrade for awkward token counts (e.g. 2^k * 197).
    Mp = (-(-M // 256) * 256) if M > 256 else M
    pad = Mp != M
    xf_p = jnp.pad(xf, ((0, Mp - M), (0, 0))) if pad else xf

    # --- attention branch: LN1 fused into qkv matmul, residual fused into proj
    qkv_p = ln_matmul(xf_p, params["ln1_g"], params["ln1_b"], params["qkv_w"],
                      bias=None, out_dtype=jnp.bfloat16)      # (Mp, 3C) bf16
    qkv = qkv_p[:M] if pad else qkv_p
    # head-major layout for the (B, H) attention grid (cheap bf16 XLA transpose)
    qkv_heads = qkv.reshape(B, N, 3, num_heads, Dh)
    qkv_heads = jnp.transpose(qkv_heads, (0, 3, 1, 2, 4)).reshape(
        B, num_heads, N, 3 * Dh)

    attn_heads = robust_attention_core(qkv_heads, h_a=h_a,
                                       loss_type=loss_type)   # (B,H,N,Dh) bf16
    attn = jnp.transpose(attn_heads, (0, 2, 1, 3)).reshape(M, C)
    attn_p = jnp.pad(attn, ((0, Mp - M), (0, 0))) if pad else attn

    x1_p = matmul_residual(attn_p, params["proj_w"], params["proj_b"],
                           xf_p)                              # (Mp, C) f32

    # --- MLP branch: LN2 fused into fc1 (+GELU), residual fused into fc2
    h_p = ln_matmul(x1_p, params["ln2_g"], params["ln2_b"], params["fc1_w"],
                    bias=params["fc1_b"], activation="gelu",
                    out_dtype=jnp.bfloat16)                   # (Mp, 4C) bf16
    x2_p = matmul_residual(h_p, params["fc2_w"], params["fc2_b"],
                           x1_p)                              # (Mp, C) f32
    x2 = x2_p[:M] if pad else x2_p
    return x2.reshape(B, N, C)


if __name__ == "__main__":
    B, N, C, H = 2, 8, 32, 4  # batch=2, seq=8, dim=32, heads=4 (head_dim=8)
    key = jax.random.PRNGKey(0)
    kx, kp = jax.random.split(key)
    x = jax.random.normal(kx, (B, N, C), jnp.float32)
    params = init_params(kp, C, mlp_ratio=4.0)

    fwd = jax.jit(functools.partial(robust_block_forward, num_heads=H,
                                    h_a=0.2, loss_type="huber", num_iter=1))
    out = jax.block_until_ready(fwd(x, params))
    assert out.shape == (B, N, C)
    assert bool(jnp.all(jnp.isfinite(out)))
    print("KERNEL_OK")
</pallas_src>

<mosaic_0001>
module attributes {stable_mosaic.version = 11 : i64} {
  func.func @_ln_matmul_kernel(%arg0: i32, %arg1: i32, %arg2: memref<16x32xf32, #tpu.memory_space<vmem>>, %arg3: memref<1x32xf32, #tpu.memory_space<vmem>>, %arg4: memref<1x32xf32, #tpu.memory_space<vmem>>, %arg5: memref<32x96xbf16, #tpu.memory_space<vmem>>, %arg6: memref<16x96xbf16, #tpu.memory_space<vmem>>, %arg7: memref<16x32xbf16, #tpu.memory_space<vmem>>) attributes {dimension_semantics = [#tpu.dimension_semantics<parallel>, #tpu.dimension_semantics<arbitrary>], iteration_bounds = array<i64: 1, 1>, scalar_prefetch = 0 : i64, scratch_operands = 1 : i64, tpu.core_type = #tpu.core_type<tc>, window_params = [{transform_indices = @transform_0, window_bounds = array<i64: 16, 32>}, {pipeline_mode = #tpu.pipeline_mode<synchronous>, transform_indices = @transform_1, window_bounds = array<i64: 1, 32>}, {pipeline_mode = #tpu.pipeline_mode<synchronous>, transform_indices = @transform_2, window_bounds = array<i64: 1, 32>}, {transform_indices = @transform_3, window_bounds = array<i64: 32, 96>}, {transform_indices = @transform_4, window_bounds = array<i64: 16, 96>}]} {
    %c0_i32 = arith.constant 0 : i32
    %0 = arith.cmpi eq, %arg1, %c0_i32 : i32
    %1 = arith.extui %0 : i1 to i32
    %c0_i32_0 = arith.constant 0 : i32
    %2 = arith.cmpi ne, %1, %c0_i32_0 : i32
    scf.if %2 {
      %c0_6 = arith.constant 0 : index
      %c0_7 = arith.constant 0 : index
      %8 = vector.load %arg2[%c0_6, %c0_7] : memref<16x32xf32, #tpu.memory_space<vmem>>, vector<16x32xf32>
      %cst_8 = arith.constant dense<0.000000e+00> : vector<16xf32>
      %9 = vector.multi_reduction <add>, %8, %cst_8 [1] : vector<16x32xf32> to vector<16xf32>
      %10 = vector.shape_cast %9 : vector<16xf32> to vector<16x1xf32>
      %cst_9 = arith.constant 3.200000e+01 : f32
      %11 = vector.broadcast %cst_9 : f32 to vector<16x1xf32>
      %12 = arith.divf %10, %11 : vector<16x1xf32>
      %13 = vector.broadcast %12 : vector<16x1xf32> to vector<16x32xf32>
      %14 = arith.subf %8, %13 : vector<16x32xf32>
      %15 = arith.mulf %14, %14 : vector<16x32xf32>
      %cst_10 = arith.constant dense<0.000000e+00> : vector<16xf32>
      %16 = vector.multi_reduction <add>, %15, %cst_10 [1] : vector<16x32xf32> to vector<16xf32>
      %17 = vector.shape_cast %16 : vector<16xf32> to vector<16x1xf32>
      %cst_11 = arith.constant 3.200000e+01 : f32
      %18 = vector.broadcast %cst_11 : f32 to vector<16x1xf32>
      %19 = arith.divf %17, %18 : vector<16x1xf32>
      %cst_12 = arith.constant 9.99999974E-6 : f32
      %20 = vector.broadcast %cst_12 : f32 to vector<16x1xf32>
      %21 = arith.addf %19, %20 : vector<16x1xf32>
      %22 = math.rsqrt %21 : vector<16x1xf32>
      %23 = vector.broadcast %22 : vector<16x1xf32> to vector<16x32xf32>
      %24 = arith.mulf %14, %23 : vector<16x32xf32>
      %c0_13 = arith.constant 0 : index
      %c0_14 = arith.constant 0 : index
      %25 = vector.load %arg3[%c0_13, %c0_14] : memref<1x32xf32, #tpu.memory_space<vmem>>, vector<1x32xf32>
      %26 = vector.broadcast %25 : vector<1x32xf32> to vector<16x32xf32>
      %27 = arith.mulf %24, %26 : vector<16x32xf32>
      %c0_15 = arith.constant 0 : index
      %c0_16 = arith.constant 0 : index
      %28 = vector.load %arg4[%c0_15, %c0_16] : memref<1x32xf32, #tpu.memory_space<vmem>>, vector<1x32xf32>
      %29 = vector.broadcast %28 : vector<1x32xf32> to vector<16x32xf32>
      %30 = arith.addf %27, %29 : vector<16x32xf32>
      %31 = arith.truncf %30 : vector<16x32xf32> to vector<16x32xbf16>
      %c0_17 = arith.constant 0 : index
      %c0_18 = arith.constant 0 : index
      %32 = vector.load %arg7[%c0_17, %c0_18] : memref<16x32xbf16, #tpu.memory_space<vmem>>, vector<16x32xbf16>
      tpu.vector_store %arg7[%c0_17, %c0_18], %31 {strides = array<i32>} : memref<16x32xbf16, #tpu.memory_space<vmem>>, vector<16x32xbf16>,
    } else {
    }
    %c0 = arith.constant 0 : index
    %c0_1 = arith.constant 0 : index
    %3 = vector.load %arg7[%c0, %c0_1] : memref<16x32xbf16, #tpu.memory_space<vmem>>, vector<16x32xbf16>
    %c0_2 = arith.constant 0 : index
    %c0_3 = arith.constant 0 : index
    %4 = vector.load %arg5[%c0_2, %c0_3] : memref<32x96xbf16, #tpu.memory_space<vmem>>, vector<32x96xbf16>
    %cst = arith.constant dense<0.000000e+00> : vector<16x96xf32>
    %5 = tpu.matmul %3, %4, %cst {dimension_numbers = #tpu.dot_dimension_numbers<[1], [0], [0], [1], [0, 0, 1, 1], [], []>} : vector<16x32xbf16>, vector<32x96xbf16>, vector<16x96xf32> -> vector<16x96xf32>
    %6 = arith.truncf %5 : vector<16x96xf32> to vector<16x96xbf16>
    %c0_4 = arith.constant 0 : index
    %c0_5 = arith.constant 0 : index
    %7 = vector.load %arg6[%c0_4, %c0_5] : memref<16x96xbf16, #tpu.memory_space<vmem>>, vector<16x96xbf16>
    tpu.vector_store %arg6[%c0_4, %c0_5], %6 {strides = array<i32>} : memref<16x96xbf16, #tpu.memory_space<vmem>>, vector<16x96xbf16>,
    return
  }
  func.func @transform_0(%arg0: i32, %arg1: i32) -> (i32, i32) {
    %c0_i32 = arith.constant 0 : i32
    %c0_i32_0 = arith.constant 0 : i32
    return %arg0, %c0_i32 : i32, i32
  }
  func.func @transform_1(%arg0: i32, %arg1: i32) -> (i32, i32) {
    %c0_i32 = arith.constant 0 : i32
    %c0_i32_0 = arith.constant 0 : i32
    %c0_i32_1 = arith.constant 0 : i32
    return %c0_i32, %c0_i32_0 : i32, i32
  }
  func.func @transform_2(%arg0: i32, %arg1: i32) -> (i32, i32) {
    %c0_i32 = arith.constant 0 : i32
    %c0_i32_0 = arith.constant 0 : i32
    %c0_i32_1 = arith.constant 0 : i32
    return %c0_i32, %c0_i32_0 : i32, i32
  }
  func.func @transform_3(%arg0: i32, %arg1: i32) -> (i32, i32) {
    %c0_i32 = arith.constant 0 : i32
    %c0_i32_0 = arith.constant 0 : i32
    return %c0_i32, %arg1 : i32, i32
  }
  func.func @transform_4(%arg0: i32, %arg1: i32) -> (i32, i32) {
    %c0_i32 = arith.constant 0 : i32
    return %arg0, %arg1 : i32, i32
  }
}

module attributes {stable_mosaic.version = 11 : i64} {
  func.func @_robust_attn_kernel(%arg0: i32, %arg1: i32, %arg2: memref<1x1x8x24xbf16, #tpu.memory_space<vmem>>, %arg3: memref<1x1x8x8xbf16, #tpu.memory_space<vmem>>) attributes {dimension_semantics = [#tpu.dimension_semantics<parallel>, #tpu.dimension_semantics<parallel>], iteration_bounds = array<i64: 2, 4>, scalar_prefetch = 0 : i64, scratch_operands = 0 : i64, tpu.core_type = #tpu.core_type<tc>, window_params = [{transform_indices = @transform_0, window_bounds = array<i64: 1, 1, 8, 24>}, {transform_indices = @transform_1, window_bounds = array<i64: 1, 1, 8, 8>}]} {
    %c0 = arith.constant 0 : index
    %c0_0 = arith.constant 0 : index
    %c0_1 = arith.constant 0 : index
    %c0_2 = arith.constant 0 : index
    %0 = vector.load %arg2[%c0, %c0_0, %c0_1, %c0_2] : memref<1x1x8x24xbf16, #tpu.memory_space<vmem>>, vector<1x1x8x24xbf16>
    %1 = vector.shape_cast %0 : vector<1x1x8x24xbf16> to vector<8x24xbf16>
    %2 = vector.extract_strided_slice %1 {offsets = [0, 8], sizes = [8, 8], strides = [1, 1]} : vector<8x24xbf16> to vector<8x8xbf16>
    %3 = arith.extf %2 : vector<8x8xbf16> to vector<8x8xf32>
    %4 = vector.extract_strided_slice %1 {offsets = [0, 16], sizes = [8, 8], strides = [1, 1]} : vector<8x24xbf16> to vector<8x8xbf16>
    %5 = arith.extf %4 : vector<8x8xbf16> to vector<8x8xf32>
    %6 = arith.mulf %3, %3 : vector<8x8xf32>
    %cst = arith.constant dense<0.000000e+00> : vector<8xf32>
    %7 = vector.multi_reduction <add>, %6, %cst [1] : vector<8x8xf32> to vector<8xf32>
    %8 = vector.shape_cast %7 : vector<8xf32> to vector<8x1xf32>
    %cst_3 = arith.constant 1.000000e-24 : f32
    %9 = vector.broadcast %cst_3 : f32 to vector<8x1xf32>
    %10 = arith.maximumf %8, %9 : vector<8x1xf32>
    %11 = math.rsqrt %10 : vector<8x1xf32>
    %12 = vector.broadcast %11 : vector<8x1xf32> to vector<8x8xf32>
    %13 = arith.mulf %3, %12 : vector<8x8xf32>
    %14 = arith.truncf %13 : vector<8x8xf32> to vector<8x8xbf16>
    %15 = arith.truncf %5 : vector<8x8xf32> to vector<8x8xbf16>
    %cst_4 = arith.constant dense<0.000000e+00> : vector<8x8xf32>
    %16 = tpu.matmul %14, %14, %cst_4 {dimension_numbers = #tpu.dot_dimension_numbers<[1], [1], [0], [0], [0, 0, 1, 0], [], []>} : vector<8x8xbf16>, vector<8x8xbf16>, vector<8x8xf32> -> vector<8x8xf32>
    %cst_5 = arith.constant 2.000000e+00 : f32
    %17 = vector.broadcast %cst_5 : f32 to vector<8x8xf32>
    %18 = arith.mulf %17, %16 : vector<8x8xf32>
    %cst_6 = arith.constant 2.000000e+00 : f32
    %19 = vector.broadcast %cst_6 : f32 to vector<8x8xf32>
    %20 = arith.subf %19, %18 : vector<8x8xf32>
    %cst_7 = arith.constant 0.000000e+00 : f32
    %21 = vector.broadcast %cst_7 : f32 to vector<8x8xf32>
    %22 = arith.maximumf %20, %21 : vector<8x8xf32>
    %cst_8 = arith.constant -0.353553385 : f32
    %23 = vector.broadcast %cst_8 : f32 to vector<8x8xf32>
    %24 = arith.mulf %23, %22 : vector<8x8xf32>
    %25 = math.exp %24 : vector<8x8xf32>
    %26 = arith.mulf %5, %5 : vector<8x8xf32>
    %cst_9 = arith.constant dense<0.000000e+00> : vector<8xf32>
    %27 = vector.multi_reduction <add>, %26, %cst_9 [1] : vector<8x8xf32> to vector<8xf32>
    %28 = vector.shape_cast %27 : vector<8xf32> to vector<8x1xf32>
    %cst_10 = arith.constant 1.000000e+00 : f32
    %29 = vector.broadcast %cst_10 : f32 to vector<1x8xf32>
    %cst_11 = arith.constant dense<0.000000e+00> : vector<1x8xf32>
    %30 = tpu.matmul %29, %26, %cst_11 {dimension_numbers = #tpu.dot_dimension_numbers<[1], [1], [0], [0], [0, 0, 1, 0], [], []>} : vector<1x8xf32>, vector<8x8xf32>, vector<1x8xf32> -> vector<1x8xf32>
    %cst_12 = arith.constant dense<0.000000e+00> : vector<8x8xf32>
    %31 = tpu.matmul %15, %15, %cst_12 {dimension_numbers = #tpu.dot_dimension_numbers<[1], [1], [0], [0], [0, 0, 1, 0], [], []>} : vector<8x8xbf16>, vector<8x8xbf16>, vector<8x8xf32> -> vector<8x8xf32>
    %32 = vector.broadcast %28 : vector<8x1xf32> to vector<8x8xf32>
    %33 = vector.broadcast %30 : vector<1x8xf32> to vector<8x8xf32>
    %34 = arith.addf %32, %33 : vector<8x8xf32>
    %cst_13 = arith.constant 2.000000e+00 : f32
    %35 = vector.broadcast %cst_13 : f32 to vector<8x8xf32>
    %36 = arith.mulf %35, %31 : vector<8x8xf32>
    %37 = arith.subf %34, %36 : vector<8x8xf32>
    %cst_14 = arith.constant 0.000000e+00 : f32
    %38 = vector.broadcast %cst_14 : f32 to vector<8x8xf32>
    %39 = arith.maximumf %37, %38 : vector<8x8xf32>
    %cst_15 = arith.constant -0.353553385 : f32
    %40 = vector.broadcast %cst_15 : f32 to vector<8x8xf32>
    %41 = arith.mulf %40, %39 : vector<8x8xf32>
    %42 = math.exp %41 : vector<8x8xf32>
    %43 = arith.mulf %25, %42 : vector<8x8xf32>
    %cst_16 = arith.constant dense<0.000000e+00> : vector<8xf32>
    %44 = vector.multi_reduction <add>, %43, %cst_16 [0] : vector<8x8xf32> to vector<8xf32>
    %45 = vector.shape_cast %44 : vector<8xf32> to vector<1x8xf32>
    %cst_17 = arith.constant 1.250000e-01 : f32
    %46 = vector.broadcast %cst_17 : f32 to vector<1x8xf32>
    %47 = arith.mulf %45, %46 : vector<1x8xf32>
    %cst_18 = arith.constant dense<0.000000e+00> : vector<1xf32>
    %48 = vector.multi_reduction <add>, %47, %cst_18 [1] : vector<1x8xf32> to vector<1xf32>
    %49 = vector.shape_cast %48 : vector<1xf32> to vector<1x1xf32>
    %cst_19 = arith.constant 1.250000e-01 : f32
    %50 = vector.broadcast %cst_19 : f32 to vector<1x1xf32>
    %51 = arith.mulf %49, %50 : vector<1x1xf32>
    %cst_20 = arith.constant 1.000000e+00 : f32
    %52 = vector.broadcast %cst_20 : f32 to vector<1x8xf32>
    %53 = arith.addf %52, %47 : vector<1x8xf32>
    %54 = vector.broadcast %51 : vector<1x1xf32> to vector<1x8xf32>
    %55 = arith.addf %53, %54 : vector<1x8xf32>
    %56 = math.sqrt %55 : vector<1x8xf32>
    %cst_21 = arith.constant 2.000000e-01 : f32
    %57 = vector.broadcast %cst_21 : f32 to vector<1x8xf32>
    %58 = arith.cmpf ole, %56, %57 : vector<1x8xf32>
    %cst_22 = arith.constant 2.000000e-01 : f32
    %59 = vector.broadcast %cst_22 : f32 to vector<1x8xf32>
    %60 = arith.divf %59, %56 : vector<1x8xf32>
    %cst_23 = arith.constant 1.000000e+00 : f32
    %61 = vector.broadcast %cst_23 : f32 to vector<1x8xf32>
    %62 = arith.select %58, %61, %60 : vector<1x8xi1>, vector<1x8xf32>
    %63 = math.log %62 : vector<1x8xf32>
    %cst_24 = arith.constant dense<0xFF800000> : vector<1xf32>
    %64 = vector.multi_reduction <maximumf>, %63, %cst_24 [1] : vector<1x8xf32> to vector<1xf32>
    %65 = vector.shape_cast %64 : vector<1xf32> to vector<1x1xf32>
    %66 = vector.broadcast %65 : vector<1x1xf32> to vector<1x8xf32>
    %67 = arith.subf %63, %66 : vector<1x8xf32>
    %68 = math.exp %67 : vector<1x8xf32>
    %cst_25 = arith.constant dense<0.000000e+00> : vector<1xf32>
    %69 = vector.multi_reduction <add>, %68, %cst_25 [1] : vector<1x8xf32> to vector<1xf32>
    %70 = vector.shape_cast %69 : vector<1xf32> to vector<1x1xf32>
    %71 = math.log %70 : vector<1x1xf32>
    %72 = arith.addf %65, %71 : vector<1x1xf32>
    %73 = vector.broadcast %72 : vector<1x1xf32> to vector<1x8xf32>
    %74 = arith.subf %63, %73 : vector<1x8xf32>
    %cst_26 = arith.constant dense<0.000000e+00> : vector<8xf32>
    %75 = vector.multi_reduction <add>, %25, %cst_26 [0] : vector<8x8xf32> to vector<8xf32>
    %76 = vector.shape_cast %75 : vector<8xf32> to vector<1x8xf32>
    %cst_27 = arith.constant 1.250000e-01 : f32
    %77 = vector.broadcast %cst_27 : f32 to vector<1x8xf32>
    %78 = arith.mulf %76, %77 : vector<1x8xf32>
    %cst_28 = arith.constant dense<0.000000e+00> : vector<1xf32>
    %79 = vector.multi_reduction <add>, %78, %cst_28 [1] : vector<1x8xf32> to vector<1xf32>
    %80 = vector.shape_cast %79 : vector<1xf32> to vector<1x1xf32>
    %cst_29 = arith.constant 1.250000e-01 : f32
    %81 = vector.broadcast %cst_29 : f32 to vector<1x1xf32>
    %82 = arith.mulf %80, %81 : vector<1x1xf32>
    %cst_30 = arith.constant 1.000000e+00 : f32
    %83 = vector.broadcast %cst_30 : f32 to vector<1x8xf32>
    %84 = arith.addf %83, %78 : vector<1x8xf32>
    %85 = vector.broadcast %82 : vector<1x1xf32> to vector<1x8xf32>
    %86 = arith.addf %84, %85 : vector<1x8xf32>
    %87 = math.sqrt %86 : vector<1x8xf32>
    %cst_31 = arith.constant 2.000000e-01 : f32
    %88 = vector.broadcast %cst_31 : f32 to vector<1x8xf32>
    %89 = arith.cmpf ole, %87, %88 : vector<1x8xf32>
    %cst_32 = arith.constant 2.000000e-01 : f32
    %90 = vector.broadcast %cst_32 : f32 to vector<1x8xf32>
    %91 = arith.divf %90, %87 : vector<1x8xf32>
    %cst_33 = arith.constant 1.000000e+00 : f32
    %92 = vector.broadcast %cst_33 : f32 to vector<1x8xf32>
    %93 = arith.select %89, %92, %91 : vector<1x8xi1>, vector<1x8xf32>
    %94 = math.log %93 : vector<1x8xf32>
    %cst_34 = arith.constant dense<0xFF800000> : vector<1xf32>
    %95 = vector.multi_reduction <maximumf>, %94, %cst_34 [1] : vector<1x8xf32> to vector<1xf32>
    %96 = vector.shape_cast %95 : vector<1xf32> to vector<1x1xf32>
    %97 = vector.broadcast %96 : vector<1x1xf32> to vector<1x8xf32>
    %98 = arith.subf %94, %97 : vector<1x8xf32>
    %99 = math.exp %98 : vector<1x8xf32>
    %cst_35 = arith.constant dense<0.000000e+00> : vector<1xf32>
    %100 = vector.multi_reduction <add>, %99, %cst_35 [1] : vector<1x8xf32> to vector<1xf32>
    %101 = vector.shape_cast %100 : vector<1xf32> to vector<1x1xf32>
    %102 = math.log %101 : vector<1x1xf32>
    %103 = arith.addf %96, %102 : vector<1x1xf32>
    %104 = vector.broadcast %103 : vector<1x1xf32> to vector<1x8xf32>
    %105 = arith.subf %94, %104 : vector<1x8xf32>
    %106 = arith.subf %74, %105 : vector<1x8xf32>
    %107 = math.exp %106 : vector<1x8xf32>
    %c0_36 = arith.constant 0 : index
    %c0_37 = arith.constant 0 : index
    %c0_38 = arith.constant 0 : index
    %c0_39 = arith.constant 0 : index
    %108 = vector.load %arg2[%c0_36, %c0_37, %c0_38, %c0_39] : memref<1x1x8x24xbf16, #tpu.memory_space<vmem>>, vector<1x1x8x24xbf16>
    %109 = vector.shape_cast %108 : vector<1x1x8x24xbf16> to vector<8x24xbf16>
    %110 = vector.extract_strided_slice %109 {offsets = [0, 0], sizes = [8, 8], strides = [1, 1]} : vector<8x24xbf16> to vector<8x8xbf16>
    %111 = arith.extf %110 : vector<8x8xbf16> to vector<8x8xf32>
    %112 = arith.mulf %111, %111 : vector<8x8xf32>
    %cst_40 = arith.constant dense<0.000000e+00> : vector<8xf32>
    %113 = vector.multi_reduction <add>, %112, %cst_40 [1] : vector<8x8xf32> to vector<8xf32>
    %114 = vector.shape_cast %113 : vector<8xf32> to vector<8x1xf32>
    %115 = arith.truncf %111 : vector<8x8xf32> to vector<8x8xbf16>
    %cst_41 = arith.constant dense<0.000000e+00> : vector<8x8xf32>
    %116 = tpu.matmul %115, %14, %cst_41 {dimension_numbers = #tpu.dot_dimension_numbers<[1], [1], [0], [0], [0, 0, 1, 0], [], []>} : vector<8x8xbf16>, vector<8x8xbf16>, vector<8x8xf32> -> vector<8x8xf32>
    %cst_42 = arith.constant 1.000000e+00 : f32
    %117 = vector.broadcast %cst_42 : f32 to vector<8x1xf32>
    %118 = arith.addf %114, %117 : vector<8x1xf32>
    %cst_43 = arith.constant 2.000000e+00 : f32
    %119 = vector.broadcast %cst_43 : f32 to vector<8x8xf32>
    %120 = arith.mulf %119, %116 : vector<8x8xf32>
    %121 = vector.broadcast %118 : vector<8x1xf32> to vector<8x8xf32>
    %122 = arith.subf %121, %120 : vector<8x8xf32>
    %cst_44 = arith.constant 0.000000e+00 : f32
    %123 = vector.broadcast %cst_44 : f32 to vector<8x8xf32>
    %124 = arith.maximumf %122, %123 : vector<8x8xf32>
    %cst_45 = arith.constant -0.353553385 : f32
    %125 = vector.broadcast %cst_45 : f32 to vector<8x8xf32>
    %126 = arith.mulf %125, %124 : vector<8x8xf32>
    %127 = vector.broadcast %105 : vector<1x8xf32> to vector<8x8xf32>
    %128 = arith.addf %127, %126 : vector<8x8xf32>
    %cst_46 = arith.constant dense<0xFF800000> : vector<8xf32>
    %129 = vector.multi_reduction <maximumf>, %128, %cst_46 [1] : vector<8x8xf32> to vector<8xf32>
    %130 = vector.shape_cast %129 : vector<8xf32> to vector<8x1xf32>
    %131 = vector.broadcast %130 : vector<8x1xf32> to vector<8x8xf32>
    %132 = arith.subf %128, %131 : vector<8x8xf32>
    %133 = math.exp %132 : vector<8x8xf32>
    %cst_47 = arith.constant dense<0.000000e+00> : vector<8xf32>
    %134 = vector.multi_reduction <add>, %133, %cst_47 [1] : vector<8x8xf32> to vector<8xf32>
    %135 = vector.shape_cast %134 : vector<8xf32> to vector<8x1xf32>
    %136 = vector.broadcast %107 : vector<1x8xf32> to vector<8x8xf32>
    %137 = arith.mulf %133, %136 : vector<8x8xf32>
    %138 = tpu.reciprocal %135 {approx = true} : vector<8x1xf32> -> vector<8x1xf32>
    %139 = vector.broadcast %138 : vector<8x1xf32> to vector<8x8xf32>
    %140 = arith.mulf %137, %139 : vector<8x8xf32>
    %141 = arith.truncf %140 : vector<8x8xf32> to vector<8x8xbf16>
    %cst_48 = arith.constant dense<0.000000e+00> : vector<8x8xf32>
    %142 = tpu.matmul %141, %15, %cst_48 {dimension_numbers = #tpu.dot_dimension_numbers<[1], [0], [0], [1], [0, 0, 1, 1], [], []>} : vector<8x8xbf16>, vector<8x8xbf16>, vector<8x8xf32> -> vector<8x8xf32>
    %143 = arith.truncf %142 : vector<8x8xf32> to vector<8x8xbf16>
    %c0_49 = arith.constant 0 : index
    %c0_50 = arith.constant 0 : index
    %c0_51 = arith.constant 0 : index
    %c0_52 = arith.constant 0 : index
    %144 = vector.load %arg3[%c0_49, %c0_50, %c0_51, %c0_52] : memref<1x1x8x8xbf16, #tpu.memory_space<vmem>>, vector<1x1x8x8xbf16>
    %145 = vector.shape_cast %144 : vector<1x1x8x8xbf16> to vector<8x8xbf16>
    %146 = vector.shape_cast %143 : vector<8x8xbf16> to vector<1x1x8x8xbf16>
    tpu.vector_store %arg3[%c0_49, %c0_50, %c0_51, %c0_52], %146 {strides = array<i32>} : memref<1x1x8x8xbf16, #tpu.memory_space<vmem>>, vector<1x1x8x8xbf16>,
    return
  }
  func.func @transform_0(%arg0: i32, %arg1: i32) -> (i32, i32, i32, i32) {
    %c0_i32 = arith.constant 0 : i32
    %c0_i32_0 = arith.constant 0 : i32
    %c0_i32_1 = arith.constant 0 : i32
    return %arg0, %arg1, %c0_i32, %c0_i32_0 : i32, i32, i32, i32
  }
  func.func @transform_1(%arg0: i32, %arg1: i32) -> (i32, i32, i32, i32) {
    %c0_i32 = arith.constant 0 : i32
    %c0_i32_0 = arith.constant 0 : i32
    %c0_i32_1 = arith.constant 0 : i32
    return %arg0, %arg1, %c0_i32, %c0_i32_0 : i32, i32, i32, i32
  }
}

module attributes {stable_mosaic.version = 11 : i64} {
  func.func @_ln_matmul_kernel(%arg0: i32, %arg1: i32, %arg2: memref<16x32xf32, #tpu.memory_space<vmem>>, %arg3: memref<1x32xf32, #tpu.memory_space<vmem>>, %arg4: memref<1x32xf32, #tpu.memory_space<vmem>>, %arg5: memref<32x128xbf16, #tpu.memory_space<vmem>>, %arg6: memref<1x128xf32, #tpu.memory_space<vmem>>, %arg7: memref<16x128xbf16, #tpu.memory_space<vmem>>, %arg8: memref<16x32xbf16, #tpu.memory_space<vmem>>) attributes {dimension_semantics = [#tpu.dimension_semantics<parallel>, #tpu.dimension_semantics<arbitrary>], iteration_bounds = array<i64: 1, 1>, scalar_prefetch = 0 : i64, scratch_operands = 1 : i64, tpu.core_type = #tpu.core_type<tc>, window_params = [{transform_indices = @transform_0, window_bounds = array<i64: 16, 32>}, {pipeline_mode = #tpu.pipeline_mode<synchronous>, transform_indices = @transform_1, window_bounds = array<i64: 1, 32>}, {pipeline_mode = #tpu.pipeline_mode<synchronous>, transform_indices = @transform_2, window_bounds = array<i64: 1, 32>}, {transform_indices = @transform_3, window_bounds = array<i64: 32, 128>}, {transform_indices = @transform_4, window_bounds = array<i64: 1, 128>}, {transform_indices = @transform_5, window_bounds = array<i64: 16, 128>}]} {
    %c0_i32 = arith.constant 0 : i32
    %0 = arith.cmpi eq, %arg1, %c0_i32 : i32
    %1 = arith.extui %0 : i1 to i32
    %c0_i32_0 = arith.constant 0 : i32
    %2 = arith.cmpi ne, %1, %c0_i32_0 : i32
    scf.if %2 {
      %c0_11 = arith.constant 0 : index
      %c0_12 = arith.constant 0 : index
      %19 = vector.load %arg2[%c0_11, %c0_12] : memref<16x32xf32, #tpu.memory_space<vmem>>, vector<16x32xf32>
      %cst_13 = arith.constant dense<0.000000e+00> : vector<16xf32>
      %20 = vector.multi_reduction <add>, %19, %cst_13 [1] : vector<16x32xf32> to vector<16xf32>
      %21 = vector.shape_cast %20 : vector<16xf32> to vector<16x1xf32>
      %cst_14 = arith.constant 3.200000e+01 : f32
      %22 = vector.broadcast %cst_14 : f32 to vector<16x1xf32>
      %23 = arith.divf %21, %22 : vector<16x1xf32>
      %24 = vector.broadcast %23 : vector<16x1xf32> to vector<16x32xf32>
      %25 = arith.subf %19, %24 : vector<16x32xf32>
      %26 = arith.mulf %25, %25 : vector<16x32xf32>
      %cst_15 = arith.constant dense<0.000000e+00> : vector<16xf32>
      %27 = vector.multi_reduction <add>, %26, %cst_15 [1] : vector<16x32xf32> to vector<16xf32>
      %28 = vector.shape_cast %27 : vector<16xf32> to vector<16x1xf32>
      %cst_16 = arith.constant 3.200000e+01 : f32
      %29 = vector.broadcast %cst_16 : f32 to vector<16x1xf32>
      %30 = arith.divf %28, %29 : vector<16x1xf32>
      %cst_17 = arith.constant 9.99999974E-6 : f32
      %31 = vector.broadcast %cst_17 : f32 to vector<16x1xf32>
      %32 = arith.addf %30, %31 : vector<16x1xf32>
      %33 = math.rsqrt %32 : vector<16x1xf32>
      %34 = vector.broadcast %33 : vector<16x1xf32> to vector<16x32xf32>
      %35 = arith.mulf %25, %34 : vector<16x32xf32>
      %c0_18 = arith.constant 0 : index
      %c0_19 = arith.constant 0 : index
      %36 = vector.load %arg3[%c0_18, %c0_19] : memref<1x32xf32, #tpu.memory_space<vmem>>, vector<1x32xf32>
      %37 = vector.broadcast %36 : vector<1x32xf32> to vector<16x32xf32>
      %38 = arith.mulf %35, %37 : vector<16x32xf32>
      %c0_20 = arith.constant 0 : index
      %c0_21 = arith.constant 0 : index
      %39 = vector.load %arg4[%c0_20, %c0_21] : memref<1x32xf32, #tpu.memory_space<vmem>>, vector<1x32xf32>
      %40 = vector.broadcast %39 : vector<1x32xf32> to vector<16x32xf32>
      %41 = arith.addf %38, %40 : vector<16x32xf32>
      %42 = arith.truncf %41 : vector<16x32xf32> to vector<16x32xbf16>
      %c0_22 = arith.constant 0 : index
      %c0_23 = arith.constant 0 : index
      %43 = vector.load %arg8[%c0_22, %c0_23] : memref<16x32xbf16, #tpu.memory_space<vmem>>, vector<16x32xbf16>
      tpu.vector_store %arg8[%c0_22, %c0_23], %42 {strides = array<i32>} : memref<16x32xbf16, #tpu.memory_space<vmem>>, vector<16x32xbf16>,
    } else {
    }
    %c0 = arith.constant 0 : index
    %c0_1 = arith.constant 0 : index
    %3 = vector.load %arg8[%c0, %c0_1] : memref<16x32xbf16, #tpu.memory_space<vmem>>, vector<16x32xbf16>
    %c0_2 = arith.constant 0 : index
    %c0_3 = arith.constant 0 : index
    %4 = vector.load %arg5[%c0_2, %c0_3] : memref<32x128xbf16, #tpu.memory_space<vmem>>, vector<32x128xbf16>
    %cst = arith.constant dense<0.000000e+00> : vector<16x128xf32>
    %5 = tpu.matmul %3, %4, %cst {dimension_numbers = #tpu.dot_dimension_numbers<[1], [0], [0], [1], [0, 0, 1, 1], [], []>} : vector<16x32xbf16>, vector<32x128xbf16>, vector<16x128xf32> -> vector<16x128xf32>
    %c0_4 = arith.constant 0 : index
    %c0_5 = arith.constant 0 : index
    %6 = vector.load %arg6[%c0_4, %c0_5] : memref<1x128xf32, #tpu.memory_space<vmem>>, vector<1x128xf32>
    %7 = vector.broadcast %6 : vector<1x128xf32> to vector<16x128xf32>
    %8 = arith.addf %5, %7 : vector<16x128xf32>
    %cst_6 = arith.constant 5.000000e-01 : f32
    %9 = vector.broadcast %cst_6 : f32 to vector<16x128xf32>
    %10 = arith.mulf %9, %8 : vector<16x128xf32>
    %cst_7 = arith.constant 0.707106769 : f32
    %11 = vector.broadcast %cst_7 : f32 to vector<16x128xf32>
    %12 = arith.mulf %8, %11 : vector<16x128xf32>
    %13 = math.erf %12 : vector<16x128xf32>
    %cst_8 = arith.constant 1.000000e+00 : f32
    %14 = vector.broadcast %cst_8 : f32 to vector<16x128xf32>
    %15 = arith.addf %14, %13 : vector<16x128xf32>
    %16 = arith.mulf %10, %15 : vector<16x128xf32>
    %17 = arith.truncf %16 : vector<16x128xf32> to vector<16x128xbf16>
    %c0_9 = arith.constant 0 : index
    %c0_10 = arith.constant 0 : index
    %18 = vector.load %arg7[%c0_9, %c0_10] : memref<16x128xbf16, #tpu.memory_space<vmem>>, vector<16x128xbf16>
    tpu.vector_store %arg7[%c0_9, %c0_10], %17 {strides = array<i32>} : memref<16x128xbf16, #tpu.memory_space<vmem>>, vector<16x128xbf16>,
    return
  }
  func.func @transform_0(%arg0: i32, %arg1: i32) -> (i32, i32) {
    %c0_i32 = arith.constant 0 : i32
    %c0_i32_0 = arith.constant 0 : i32
    return %arg0, %c0_i32 : i32, i32
  }
  func.func @transform_1(%arg0: i32, %arg1: i32) -> (i32, i32) {
    %c0_i32 = arith.constant 0 : i32
    %c0_i32_0 = arith.constant 0 : i32
    %c0_i32_1 = arith.constant 0 : i32
    return %c0_i32, %c0_i32_0 : i32, i32
  }
  func.func @transform_2(%arg0: i32, %arg1: i32) -> (i32, i32) {
    %c0_i32 = arith.constant 0 : i32
    %c0_i32_0 = arith.constant 0 : i32
    %c0_i32_1 = arith.constant 0 : i32
    return %c0_i32, %c0_i32_0 : i32, i32
  }
  func.func @transform_3(%arg0: i32, %arg1: i32) -> (i32, i32) {
    %c0_i32 = arith.constant 0 : i32
    %c0_i32_0 = arith.constant 0 : i32
    return %c0_i32, %arg1 : i32, i32
  }
  func.func @transform_4(%arg0: i32, %arg1: i32) -> (i32, i32) {
    %c0_i32 = arith.constant 0 : i32
    %c0_i32_0 = arith.constant 0 : i32
    return %c0_i32, %arg1 : i32, i32
  }
  func.func @transform_5(%arg0: i32, %arg1: i32) -> (i32, i32) {
    %c0_i32 = arith.constant 0 : i32
    return %arg0, %arg1 : i32, i32
  }
}

module attributes {stable_mosaic.version = 11 : i64} {
  func.func @_matmul_resid_kernel(%arg0: i32, %arg1: i32, %arg2: i32, %arg3: memref<16x32xbf16, #tpu.memory_space<vmem>>, %arg4: memref<32x32xbf16, #tpu.memory_space<vmem>>, %arg5: memref<1x32xf32, #tpu.memory_space<vmem>>, %arg6: memref<16x32xf32, #tpu.memory_space<vmem>>, %arg7: memref<16x32xf32, #tpu.memory_space<vmem>>, %arg8: memref<16x32xf32, #tpu.memory_space<vmem>>) attributes {dimension_semantics = [#tpu.dimension_semantics<parallel>, #tpu.dimension_semantics<parallel>, #tpu.dimension_semantics<arbitrary>], iteration_bounds = array<i64: 1, 1, 1>, scalar_prefetch = 0 : i64, scratch_operands = 1 : i64, tpu.core_type = #tpu.core_type<tc>, window_params = [{transform_indices = @transform_0, window_bounds = array<i64: 16, 32>}, {transform_indices = @transform_1, window_bounds = array<i64: 32, 32>}, {transform_indices = @transform_2, window_bounds = array<i64: 1, 32>}, {transform_indices = @transform_3, window_bounds = array<i64: 16, 32>}, {transform_indices = @transform_4, window_bounds = array<i64: 16, 32>}]} {
    %c0_i32 = arith.constant 0 : i32
    %0 = arith.cmpi eq, %arg2, %c0_i32 : i32
    %1 = arith.extui %0 : i1 to i32
    %c0_i32_0 = arith.constant 0 : i32
    %2 = arith.cmpi ne, %1, %c0_i32_0 : i32
    scf.if %2 {
      %cst_10 = arith.constant 0.000000e+00 : f32
      %12 = vector.broadcast %cst_10 : f32 to vector<16x32xf32>
      %c0_11 = arith.constant 0 : index
      %c0_12 = arith.constant 0 : index
      %13 = vector.load %arg8[%c0_11, %c0_12] : memref<16x32xf32, #tpu.memory_space<vmem>>, vector<16x32xf32>
      tpu.vector_store %arg8[%c0_11, %c0_12], %12 {strides = array<i32>} : memref<16x32xf32, #tpu.memory_space<vmem>>, vector<16x32xf32>,
    } else {
    }
    %c0 = arith.constant 0 : index
    %c0_1 = arith.constant 0 : index
    %3 = vector.load %arg8[%c0, %c0_1] : memref<16x32xf32, #tpu.memory_space<vmem>>, vector<16x32xf32>
    %c0_2 = arith.constant 0 : index
    %c0_3 = arith.constant 0 : index
    %4 = vector.load %arg3[%c0_2, %c0_3] : memref<16x32xbf16, #tpu.memory_space<vmem>>, vector<16x32xbf16>
    %c0_4 = arith.constant 0 : index
    %c0_5 = arith.constant 0 : index
    %5 = vector.load %arg4[%c0_4, %c0_5] : memref<32x32xbf16, #tpu.memory_space<vmem>>, vector<32x32xbf16>
    %cst = arith.constant dense<0.000000e+00> : vector<16x32xf32>
    %6 = tpu.matmul %4, %5, %cst {dimension_numbers = #tpu.dot_dimension_numbers<[1], [0], [0], [1], [0, 0, 1, 1], [], []>} : vector<16x32xbf16>, vector<32x32xbf16>, vector<16x32xf32> -> vector<16x32xf32>
    %7 = arith.addf %3, %6 : vector<16x32xf32>
    %c0_6 = arith.constant 0 : index
    %c0_7 = arith.constant 0 : index
    %8 = vector.load %arg8[%c0_6, %c0_7] : memref<16x32xf32, #tpu.memory_space<vmem>>, vector<16x32xf32>
    tpu.vector_store %arg8[%c0_6, %c0_7], %7 {strides = array<i32>} : memref<16x32xf32, #tpu.memory_space<vmem>>, vector<16x32xf32>,
    %c0_i32_8 = arith.constant 0 : i32
    %9 = arith.cmpi eq, %arg2, %c0_i32_8 : i32
    %10 = arith.extui %9 : i1 to i32
    %c0_i32_9 = arith.constant 0 : i32
    %11 = arith.cmpi ne, %10, %c0_i32_9 : i32
    scf.if %11 {
      %c0_10 = arith.constant 0 : index
      %c0_11 = arith.constant 0 : index
      %12 = vector.load %arg8[%c0_10, %c0_11] : memref<16x32xf32, #tpu.memory_space<vmem>>, vector<16x32xf32>
      %c0_12 = arith.constant 0 : index
      %c0_13 = arith.constant 0 : index
      %13 = vector.load %arg5[%c0_12, %c0_13] : memref<1x32xf32, #tpu.memory_space<vmem>>, vector<1x32xf32>
      %14 = vector.broadcast %13 : vector<1x32xf32> to vector<16x32xf32>
      %15 = arith.addf %12, %14 : vector<16x32xf32>
      %c0_14 = arith.constant 0 : index
      %c0_15 = arith.constant 0 : index
      %16 = vector.load %arg6[%c0_14, %c0_15] : memref<16x32xf32, #tpu.memory_space<vmem>>, vector<16x32xf32>
      %17 = arith.addf %15, %16 : vector<16x32xf32>
      %c0_16 = arith.constant 0 : index
      %c0_17 = arith.constant 0 : index
      %18 = vector.load %arg7[%c0_16, %c0_17] : memref<16x32xf32, #tpu.memory_space<vmem>>, vector<16x32xf32>
      tpu.vector_store %arg7[%c0_16, %c0_17], %17 {strides = array<i32>} : memref<16x32xf32, #tpu.memory_space<vmem>>, vector<16x32xf32>,
    } else {
    }
    return
  }
  func.func @transform_0(%arg0: i32, %arg1: i32, %arg2: i32) -> (i32, i32) {
    %c0_i32 = arith.constant 0 : i32
    return %arg0, %arg2 : i32, i32
  }
  func.func @transform_1(%arg0: i32, %arg1: i32, %arg2: i32) -> (i32, i32) {
    %c0_i32 = arith.constant 0 : i32
    return %arg2, %arg1 : i32, i32
  }
  func.func @transform_2(%arg0: i32, %arg1: i32, %arg2: i32) -> (i32, i32) {
    %c0_i32 = arith.constant 0 : i32
    %c0_i32_0 = arith.constant 0 : i32
    return %c0_i32, %arg1 : i32, i32
  }
  func.func @transform_3(%arg0: i32, %arg1: i32, %arg2: i32) -> (i32, i32) {
    %c0_i32 = arith.constant 0 : i32
    return %arg0, %arg1 : i32, i32
  }
  func.func @transform_4(%arg0: i32, %arg1: i32, %arg2: i32) -> (i32, i32) {
    %c0_i32 = arith.constant 0 : i32
    return %arg0, %arg1 : i32, i32
  }
}

module attributes {stable_mosaic.version = 11 : i64} {
  func.func @_matmul_resid_kernel(%arg0: i32, %arg1: i32, %arg2: i32, %arg3: memref<16x128xbf16, #tpu.memory_space<vmem>>, %arg4: memref<128x32xbf16, #tpu.memory_space<vmem>>, %arg5: memref<1x32xf32, #tpu.memory_space<vmem>>, %arg6: memref<16x32xf32, #tpu.memory_space<vmem>>, %arg7: memref<16x32xf32, #tpu.memory_space<vmem>>, %arg8: memref<16x32xf32, #tpu.memory_space<vmem>>) attributes {dimension_semantics = [#tpu.dimension_semantics<parallel>, #tpu.dimension_semantics<parallel>, #tpu.dimension_semantics<arbitrary>], iteration_bounds = array<i64: 1, 1, 1>, scalar_prefetch = 0 : i64, scratch_operands = 1 : i64, tpu.core_type = #tpu.core_type<tc>, window_params = [{transform_indices = @transform_0, window_bounds = array<i64: 16, 128>}, {transform_indices = @transform_1, window_bounds = array<i64: 128, 32>}, {transform_indices = @transform_2, window_bounds = array<i64: 1, 32>}, {transform_indices = @transform_3, window_bounds = array<i64: 16, 32>}, {transform_indices = @transform_4, window_bounds = array<i64: 16, 32>}]} {
    %c0_i32 = arith.constant 0 : i32
    %0 = arith.cmpi eq, %arg2, %c0_i32 : i32
    %1 = arith.extui %0 : i1 to i32
    %c0_i32_0 = arith.constant 0 : i32
    %2 = arith.cmpi ne, %1, %c0_i32_0 : i32
    scf.if %2 {
      %cst_10 = arith.constant 0.000000e+00 : f32
      %12 = vector.broadcast %cst_10 : f32 to vector<16x32xf32>
      %c0_11 = arith.constant 0 : index
      %c0_12 = arith.constant 0 : index
      %13 = vector.load %arg8[%c0_11, %c0_12] : memref<16x32xf32, #tpu.memory_space<vmem>>, vector<16x32xf32>
      tpu.vector_store %arg8[%c0_11, %c0_12], %12 {strides = array<i32>} : memref<16x32xf32, #tpu.memory_space<vmem>>, vector<16x32xf32>,
    } else {
    }
    %c0 = arith.constant 0 : index
    %c0_1 = arith.constant 0 : index
    %3 = vector.load %arg8[%c0, %c0_1] : memref<16x32xf32, #tpu.memory_space<vmem>>, vector<16x32xf32>
    %c0_2 = arith.constant 0 : index
    %c0_3 = arith.constant 0 : index
    %4 = vector.load %arg3[%c0_2, %c0_3] : memref<16x128xbf16, #tpu.memory_space<vmem>>, vector<16x128xbf16>
    %c0_4 = arith.constant 0 : index
    %c0_5 = arith.constant 0 : index
    %5 = vector.load %arg4[%c0_4, %c0_5] : memref<128x32xbf16, #tpu.memory_space<vmem>>, vector<128x32xbf16>
    %cst = arith.constant dense<0.000000e+00> : vector<16x32xf32>
    %6 = tpu.matmul %4, %5, %cst {dimension_numbers = #tpu.dot_dimension_numbers<[1], [0], [0], [1], [0, 0, 1, 1], [], []>} : vector<16x128xbf16>, vector<128x32xbf16>, vector<16x32xf32> -> vector<16x32xf32>
    %7 = arith.addf %3, %6 : vector<16x32xf32>
    %c0_6 = arith.constant 0 : index
    %c0_7 = arith.constant 0 : index
    %8 = vector.load %arg8[%c0_6, %c0_7] : memref<16x32xf32, #tpu.memory_space<vmem>>, vector<16x32xf32>
    tpu.vector_store %arg8[%c0_6, %c0_7], %7 {strides = array<i32>} : memref<16x32xf32, #tpu.memory_space<vmem>>, vector<16x32xf32>,
    %c0_i32_8 = arith.constant 0 : i32
    %9 = arith.cmpi eq, %arg2, %c0_i32_8 : i32
    %10 = arith.extui %9 : i1 to i32
    %c0_i32_9 = arith.constant 0 : i32
    %11 = arith.cmpi ne, %10, %c0_i32_9 : i32
    scf.if %11 {
      %c0_10 = arith.constant 0 : index
      %c0_11 = arith.constant 0 : index
      %12 = vector.load %arg8[%c0_10, %c0_11] : memref<16x32xf32, #tpu.memory_space<vmem>>, vector<16x32xf32>
      %c0_12 = arith.constant 0 : index
      %c0_13 = arith.constant 0 : index
      %13 = vector.load %arg5[%c0_12, %c0_13] : memref<1x32xf32, #tpu.memory_space<vmem>>, vector<1x32xf32>
      %14 = vector.broadcast %13 : vector<1x32xf32> to vector<16x32xf32>
      %15 = arith.addf %12, %14 : vector<16x32xf32>
      %c0_14 = arith.constant 0 : index
      %c0_15 = arith.constant 0 : index
      %16 = vector.load %arg6[%c0_14, %c0_15] : memref<16x32xf32, #tpu.memory_space<vmem>>, vector<16x32xf32>
      %17 = arith.addf %15, %16 : vector<16x32xf32>
      %c0_16 = arith.constant 0 : index
      %c0_17 = arith.constant 0 : index
      %18 = vector.load %arg7[%c0_16, %c0_17] : memref<16x32xf32, #tpu.memory_space<vmem>>, vector<16x32xf32>
      tpu.vector_store %arg7[%c0_16, %c0_17], %17 {strides = array<i32>} : memref<16x32xf32, #tpu.memory_space<vmem>>, vector<16x32xf32>,
    } else {
    }
    return
  }
  func.func @transform_0(%arg0: i32, %arg1: i32, %arg2: i32) -> (i32, i32) {
    %c0_i32 = arith.constant 0 : i32
    return %arg0, %arg2 : i32, i32
  }
  func.func @transform_1(%arg0: i32, %arg1: i32, %arg2: i32) -> (i32, i32) {
    %c0_i32 = arith.constant 0 : i32
    return %arg2, %arg1 : i32, i32
  }
  func.func @transform_2(%arg0: i32, %arg1: i32, %arg2: i32) -> (i32, i32) {
    %c0_i32 = arith.constant 0 : i32
    %c0_i32_0 = arith.constant 0 : i32
    return %c0_i32, %arg1 : i32, i32
  }
  func.func @transform_3(%arg0: i32, %arg1: i32, %arg2: i32) -> (i32, i32) {
    %c0_i32 = arith.constant 0 : i32
    return %arg0, %arg1 : i32, i32
  }
  func.func @transform_4(%arg0: i32, %arg1: i32, %arg2: i32) -> (i32, i32) {
    %c0_i32 = arith.constant 0 : i32
    return %arg0, %arg1 : i32, i32
  }
}

</mosaic_0001>

<llo_original>
// kernel: robust_block_forward.5
$region0: #{robust_block_forward.5}
  #allocation0 [shape = 'u32[]', space=smem, size = 0x4, offset = 0x4, fixed_abs, tag = 'smem constant byte address 0x4 - core index']
  #allocation1 [shape = 'u32[144,128]{1,0:T(1,128)}', space=vmem, size = 0x12000, scoped, tag = 'internal scratch']
  #allocation2 [shape = 'bf16[16,32]{1,0:T(16,128)(2,1)}', space=vmem, size = 0x1000, scoped, tag = 'scratch operand']
  %s0 = inlined_call_operand.vmem [shape: f32[16,32], index: 0, kind: input, shape index: {}]
  %s1 = inlined_call_operand.vmem [shape: f32[1,32], index: 1, kind: input, shape index: {}]
  %s2 = inlined_call_operand.vmem [shape: f32[1,32], index: 2, kind: input, shape index: {}]
  %s3 = inlined_call_operand.vmem [shape: bf16[32,96], index: 3, kind: input, shape index: {}]
  %s4 = inlined_call_operand.vmem [shape: bf16[16,96], index: 4, kind: output, shape index: {}]
  %s5 = sld [smem:[#allocation0]]
  $region30: #{robust_block_forward.5} parent=0
    _
  %s7 = ssub.s32 1, %s5
  %s8 = scalar_select 0, %s7, %s5
  // Predicated region
  $region2: #{robust_block_forward.5} parent=0 // pred_check
    _
  $region3: #{robust_block_forward.5} parent=0 // pred_check_branch
    %10 = sbr.rel (0) target = $region5
  $region4: #{robust_block_forward.5} parent=0 // pred_region
    _
  $region5: #{robust_block_forward.5} parent=0 // pred_fallthru
    _
  // Predicated region
  $region6: #{robust_block_forward.5} parent=0 // pred_check
    _
  $region7: #{robust_block_forward.5} parent=0 // pred_check_branch
    %12 = sbr.rel (0) target = $region9
  $region8: #{robust_block_forward.5} parent=0 // pred_region
    _
  $region9: #{robust_block_forward.5} parent=0 // pred_fallthru
    _
  // Predicated region
  $region10: #{robust_block_forward.5} parent=0 // pred_check
    _
  $region11: #{robust_block_forward.5} parent=0 // pred_check_branch
    %14 = sbr.rel (0) target = $region13
  $region12: #{robust_block_forward.5} parent=0 // pred_region
    _
  $region13: #{robust_block_forward.5} parent=0 // pred_fallthru
    _
  // Predicated region
  $region14: #{robust_block_forward.5} parent=0 // pred_check
    _
  $region15: #{robust_block_forward.5} parent=0 // pred_check_branch
    %16 = sbr.rel (0) target = $region17
  $region16: #{robust_block_forward.5} parent=0 // pred_region
    _
  $region17: #{robust_block_forward.5} parent=0 // pred_fallthru
    _
  %p18 = scmp.eq.s32.totalorder 0, 0
  // Predicated region
  $region18: #{robust_block_forward.5} parent=0 // pred_check
    %p19 = pneg %p18
  $region19: #{robust_block_forward.5} parent=0 // pred_check_branch
    %21 = sbr.rel (%p19) target = $region21
  $region20: #{robust_block_forward.5} parent=0 // pred_region
    %v22 = vld [vmem:[%s0] sm:$0xff]
    %v23 = vld [vmem:[%s0 + $0x8] sm:$0xff]
    %vm24 = vcmask 261120
    %v25 = vsel %vm24, %v22, 0.0
    %26 = vadd.xlane.f32.xlu0 %v25
    %v27 = vpop.xlane.xlu0 %26
    %v28 = vsel %vm24, %v23, 0.0
    %29 = vadd.xlane.f32.xlu0 %v28
    %v30 = vpop.xlane.xlu0 %29
    %v31 = vrcp.pop 32.0
    %v32 = vmul.f32 %v27, %v31
    %v33 = vmul.f32 %v30, %v31
    %v34 = vsub.f32 %v22, %v32
    %v35 = vsub.f32 %v23, %v33
    %v36 = vmul.f32 %v34, %v34
    %v37 = vmul.f32 %v35, %v35
    %v38 = vsel %vm24, %v36, 0.0
    %39 = vadd.xlane.f32.xlu0 %v38
    %v40 = vpop.xlane.xlu0 %39
    %v41 = vsel %vm24, %v37, 0.0
    %42 = vadd.xlane.f32.xlu0 %v41
    %v43 = vpop.xlane.xlu0 %42
    %v44 = vmul.f32 %v40, %v31
    %v45 = vmul.f32 %v43, %v31
    %v46 = vadd.f32 %v44, 1e-05
    %v47 = vadd.f32 %v45, 1e-05
    %v48 = vrsqrt.pop %v46
    %v49 = vrsqrt.pop %v47
    %v50 = vmul.f32 %v34, %v48
    %v51 = vmul.f32 %v35, %v49
    %v52 = vld [vmem:[%s1] sm:$0x1]
    %v54 = vlaneseq
    %v55 = vshrl.u32 %v54, 7
    %v56 = vsub.s32 0, %v55
    %v57 = vrot.slane %v52, %v56
    %v59 = vmul.f32 %v50, %v57
    %v60 = vmul.f32 %v51, %v57
    %v61 = vld [vmem:[%s2] sm:$0x1]
    %v63 = vlaneseq
    %v64 = vshrl.u32 %v63, 7
    %v65 = vsub.s32 0, %v64
    %v66 = vrot.slane %v61, %v65
    %v68 = vadd.f32 %v59, %v66
    %v69 = vadd.f32 %v60, %v66
    %v70 = vpack.c.bf16 %v69, %v68
    %71 = vst.msk [vmem:[#allocation2] sm:$0xff] %vm24, %v70
  $region21: #{robust_block_forward.5} parent=0 // pred_fallthru
    _
  %v72 = vld [vmem:[#allocation2] sm:$0xff]
  %v73 = vld [vmem:[%s3] sm:$0xf]
  %v74 = vld [vmem:[%s3 + $0x4] sm:$0xf]
  %v75 = vld [vmem:[%s3 + $0x8] sm:$0xf]
  %v76 = vld [vmem:[%s3 + $0xc] sm:$0xf]
  %v81 = vunpack.c.l.b16 %v73
  %v82 = vunpack.c.l.b16 %v74
  %v83 = vunpack.c.l.b16 %v75
  %v84 = vunpack.c.l.b16 %v76
  %v85 = vpack.c.b16 %v82, %v81
  %v86 = vpack.c.b16 %v84, %v83
  %vm89 = vcmask 261120
  %v91 = vsel %vm89, %v72, 0
  %93 = vmatprep.subr.bf16.mxu0 0
  %94 = vmatpush1.bf16.msra.mxu0 %v85
  %95 = vmatprep.subr.bf16.mxu0 0
  %96 = vmatpush1.bf16.msra.mxu0 %v86
  %97 = vmatprep.subr.bf16.mxu0 0
  %98 = vmatpush1.bf16.msra.mxu0 0
  %99 = vmatprep.subr.bf16.mxu0 0
  %100 = vmatpush1.bf16.msra.mxu0 0
  %101 = vmatprep.subr.bf16.mxu0 0
  %102 = vmatpush1.bf16.msra.mxu0 0
  %103 = vmatprep.subr.bf16.mxu0 0
  %104 = vmatpush1.bf16.msra.mxu0 0
  %105 = vmatprep.subr.bf16.mxu0 0
  %106 = vmatpush1.bf16.msra.mxu0 0
  %107 = vmatprep.subr.bf16.mxu0 0
  %108 = vmatpush1.bf16.msra.mxu0 0
  %109 = vmatprep.subr.bf16.mxu0 0
  %110 = vmatpush1.bf16.msra.mxu0 0
  %111 = vmatprep.subr.bf16.mxu0 0
  %112 = vmatpush1.bf16.msra.mxu0 0
  %113 = vmatprep.subr.bf16.mxu0 0
  %114 = vmatpush1.bf16.msra.mxu0 0
  %115 = vmatprep.subr.bf16.mxu0 0
  %116 = vmatpush1.bf16.msra.mxu0 0
  %117 = vmatprep.subr.bf16.mxu0 0
  %118 = vmatpush1.bf16.msra.mxu0 0
  %119 = vmatprep.subr.bf16.mxu0 0
  %120 = vmatpush1.bf16.msra.mxu0 0
  %121 = vmatprep.subr.bf16.mxu0 0
  %122 = vmatpush1.bf16.msra.mxu0 0
  %123 = vmatprep.subr.bf16.mxu0 0
  %124 = vmatpush1.bf16.msra.mxu0 0
  %125 = vmatprep.mubr.bf16.mxu0 0
  %126 = vmatmul.mubr.bf16.gmra.mrb[0].mxu0 %v91
  %v127 = vpop.f32.mrb[0].mxu0
  %v128 = vadd.f32 0.0, %v127
  %v129 = vpop.f32.mrb[0].mxu0
  %v130 = vpop.f32.mrb[0].mxu0
  %v131 = vadd.f32 0.0, %v130
  %v132 = vpop.f32.mrb[0].mxu0
  %133 = vdwg.mxu0
  %v134 = vpack.c.bf16 %v131, %v128
  %v136 = vunpack.c.l.b16 %v134
  %v137 = vunpack.c.h.b16 %v134
  %v138 = vpack.c.b16 %v136, %v136
  %v139 = vpack.c.b16 %v137, %v137
  %vm142 = vcmask 781312
  %143 = vst.msk [vmem:[%s4] sm:$0xf] %vm142, %v138
  %144 = vst.msk [vmem:[%s4 + $0x4] sm:$0xf] %vm142, %v139
  // Predicated region
  $region22: #{robust_block_forward.5} parent=0 // pred_check
    _
  $region23: #{robust_block_forward.5} parent=0 // pred_check_branch
    %146 = sbr.rel (0) target = $region25
  $region24: #{robust_block_forward.5} parent=0 // pred_region
    _
  $region25: #{robust_block_forward.5} parent=0 // pred_fallthru
    _
  // Predicated region
  $region26: #{robust_block_forward.5} parent=0 // pred_check
    _
  $region27: #{robust_block_forward.5} parent=0 // pred_check_branch
    %148 = sbr.rel (0) target = $region29
  $region28: #{robust_block_forward.5} parent=0 // pred_region
    _
  $region29: #{robust_block_forward.5} parent=0 // pred_fallthru
    _

// kernel: robust_block_forward.7
$region0: #{robust_block_forward.7}
  #allocation0 [shape = 'u32[]', space=smem, size = 0x4, offset = 0x4, fixed_abs, tag = 'smem constant byte address 0x4 - core index']
  #allocation1 [shape = 'u32[144,128]{1,0:T(1,128)}', space=vmem, size = 0x12000, scoped, tag = 'internal scratch']
  #allocation2 [shape = 'f32[16,32]{1,0:T(8,128)}', space=vmem, size = 0x2000, scoped, tag = 'scratch operand']
  %s0 = inlined_call_operand.vmem [shape: bf16[16,32], index: 0, kind: input, shape index: {}]
  %s1 = inlined_call_operand.vmem [shape: bf16[32,32], index: 1, kind: input, shape index: {}]
  %s2 = inlined_call_operand.vmem [shape: f32[1,32], index: 2, kind: input, shape index: {}]
  %s3 = inlined_call_operand.vmem [shape: f32[16,32], index: 3, kind: input, shape index: {}]
  %s4 = inlined_call_operand.vmem [shape: f32[16,32], index: 4, kind: output, shape index: {}]
  %s5 = sld [smem:[#allocation0]]
  $region34: #{robust_block_forward.7} parent=0
    _
  %s7 = ssub.s32 1, %s5
  %s8 = scalar_select 0, %s7, %s5
  // Predicated region
  $region2: #{robust_block_forward.7} parent=0 // pred_check
    _
  $region3: #{robust_block_forward.7} parent=0 // pred_check_branch
    %10 = sbr.rel (0) target = $region5
  $region4: #{robust_block_forward.7} parent=0 // pred_region
    _
  $region5: #{robust_block_forward.7} parent=0 // pred_fallthru
    _
  // Predicated region
  $region6: #{robust_block_forward.7} parent=0 // pred_check
    _
  $region7: #{robust_block_forward.7} parent=0 // pred_check_branch
    %12 = sbr.rel (0) target = $region9
  $region8: #{robust_block_forward.7} parent=0 // pred_region
    _
  $region9: #{robust_block_forward.7} parent=0 // pred_fallthru
    _
  // Predicated region
  $region10: #{robust_block_forward.7} parent=0 // pred_check
    _
  $region11: #{robust_block_forward.7} parent=0 // pred_check_branch
    %14 = sbr.rel (0) target = $region13
  $region12: #{robust_block_forward.7} parent=0 // pred_region
    _
  $region13: #{robust_block_forward.7} parent=0 // pred_fallthru
    _
  // Predicated region
  $region14: #{robust_block_forward.7} parent=0 // pred_check
    _
  $region15: #{robust_block_forward.7} parent=0 // pred_check_branch
    %16 = sbr.rel (0) target = $region17
  $region16: #{robust_block_forward.7} parent=0 // pred_region
    _
  $region17: #{robust_block_forward.7} parent=0 // pred_fallthru
    _
  %p18 = scmp.eq.s32.totalorder 0, 0
  // Predicated region
  $region18: #{robust_block_forward.7} parent=0 // pred_check
    %p19 = pneg %p18
  $region19: #{robust_block_forward.7} parent=0 // pred_check_branch
    %21 = sbr.rel (%p19) target = $region21
  $region20: #{robust_block_forward.7} parent=0 // pred_region
    %vm22 = vcmask 261120
    %23 = vst.msk [vmem:[#allocation2] sm:$0xff] %vm22, 0.0
    %24 = vst.msk [vmem:[#allocation2 + $0x8] sm:$0xff] %vm22, 0.0
  $region21: #{robust_block_forward.7} parent=0 // pred_fallthru
    _
  %v25 = vld [vmem:[#allocation2] sm:$0xff]
  %v26 = vld [vmem:[#allocation2 + $0x8] sm:$0xff]
  %v27 = vld [vmem:[%s0] sm:$0xf]
  %v28 = vld [vmem:[%s0 + $0x4] sm:$0xf]
  %v29 = vld [vmem:[%s1] sm:$0xf]
  %v30 = vld [vmem:[%s1 + $0x4] sm:$0xf]
  %v31 = vld [vmem:[%s1 + $0x8] sm:$0xf]
  %v32 = vld [vmem:[%s1 + $0xc] sm:$0xf]
  %v35 = vunpack.c.l.b16 %v27
  %v36 = vunpack.c.l.b16 %v28
  %v37 = vpack.c.b16 %v36, %v35
  %v42 = vunpack.c.l.b16 %v29
  %v43 = vunpack.c.l.b16 %v30
  %v44 = vunpack.c.l.b16 %v31
  %v45 = vunpack.c.l.b16 %v32
  %v46 = vpack.c.b16 %v43, %v42
  %v47 = vpack.c.b16 %v45, %v44
  %vm50 = vcmask 261120
  %v52 = vsel %vm50, %v37, 0
  %54 = vmatprep.subr.bf16.mxu0 0
  %55 = vmatpush1.bf16.msra.mxu0 %v46
  %56 = vmatprep.subr.bf16.mxu0 0
  %57 = vmatpush1.bf16.msra.mxu0 %v47
  %58 = vmatprep.subr.bf16.mxu0 0
  %59 = vmatpush1.bf16.msra.mxu0 0
  %60 = vmatprep.subr.bf16.mxu0 0
  %61 = vmatpush1.bf16.msra.mxu0 0
  %62 = vmatprep.subr.bf16.mxu0 0
  %63 = vmatpush1.bf16.msra.mxu0 0
  %64 = vmatprep.subr.bf16.mxu0 0
  %65 = vmatpush1.bf16.msra.mxu0 0
  %66 = vmatprep.subr.bf16.mxu0 0
  %67 = vmatpush1.bf16.msra.mxu0 0
  %68 = vmatprep.subr.bf16.mxu0 0
  %69 = vmatpush1.bf16.msra.mxu0 0
  %70 = vmatprep.subr.bf16.mxu0 0
  %71 = vmatpush1.bf16.msra.mxu0 0
  %72 = vmatprep.subr.bf16.mxu0 0
  %73 = vmatpush1.bf16.msra.mxu0 0
  %74 = vmatprep.subr.bf16.mxu0 0
  %75 = vmatpush1.bf16.msra.mxu0 0
  %76 = vmatprep.subr.bf16.mxu0 0
  %77 = vmatpush1.bf16.msra.mxu0 0
  %78 = vmatprep.subr.bf16.mxu0 0
  %79 = vmatpush1.bf16.msra.mxu0 0
  %80 = vmatprep.subr.bf16.mxu0 0
  %81 = vmatpush1.bf16.msra.mxu0 0
  %82 = vmatprep.subr.bf16.mxu0 0
  %83 = vmatpush1.bf16.msra.mxu0 0
  %84 = vmatprep.subr.bf16.mxu0 0
  %85 = vmatpush1.bf16.msra.mxu0 0
  %86 = vmatprep.mubr.bf16.mxu0 0
  %87 = vmatmul.mubr.bf16.gmra.mrb[0].mxu0 %v52
  %v88 = vpop.f32.mrb[0].mxu0
  %v89 = vadd.f32 0.0, %v88
  %v90 = vpop.f32.mrb[0].mxu0
  %v91 = vpop.f32.mrb[0].mxu0
  %v92 = vadd.f32 0.0, %v91
  %v93 = vpop.f32.mrb[0].mxu0
  %94 = vdwg.mxu0
  %v95 = vadd.f32 %v25, %v89
  %v96 = vadd.f32 %v26, %v92
  %97 = vst.msk [vmem:[#allocation2] sm:$0xff] %vm50, %v95
  %98 = vst.msk [vmem:[#allocation2 + $0x8] sm:$0xff] %vm50, %v96
  // Predicated region
  $region22: #{robust_block_forward.7} parent=0 // pred_check
    %p99 = pneg %p18
  $region23: #{robust_block_forward.7} parent=0 // pred_check_branch
    %101 = sbr.rel (%p99) target = $region25
  $region24: #{robust_block_forward.7} parent=0 // pred_region
    %v102 = vld [vmem:[#allocation2] sm:$0xff]
    %v103 = vld [vmem:[#allocation2 + $0x8] sm:$0xff]
    %v104 = vld [vmem:[%s2] sm:$0x1]
    %v106 = vlaneseq
    %v107 = vshrl.u32 %v106, 7
    %v108 = vsub.s32 0, %v107
    %v109 = vrot.slane %v104, %v108
    %v111 = vadd.f32 %v102, %v109
    %v112 = vadd.f32 %v103, %v109
    %v113 = vld [vmem:[%s3] sm:$0xff]
    %v114 = vld [vmem:[%s3 + $0x8] sm:$0xff]
    %v115 = vadd.f32 %v111, %v113
    %v116 = vadd.f32 %v112, %v114
    %117 = vst.msk [vmem:[%s4] sm:$0xff] %vm50, %v115
    %118 = vst.msk [vmem:[%s4 + $0x8] sm:$0xff] %vm50, %v116
  $region25: #{robust_block_forward.7} parent=0 // pred_fallthru
    _
  // Predicated region
  $region26: #{robust_block_forward.7} parent=0 // pred_check
    _
  $region27: #{robust_block_forward.7} parent=0 // pred_check_branch
    %120 = sbr.rel (0) target = $region29
  $region28: #{robust_block_forward.7} parent=0 // pred_region
    _
  $region29: #{robust_block_forward.7} parent=0 // pred_fallthru
    _
  // Predicated region
  $region30: #{robust_block_forward.7} parent=0 // pred_check
    _
  $region31: #{robust_block_forward.7} parent=0 // pred_check_branch
    %122 = sbr.rel (0) target = $region33
  $region32: #{robust_block_forward.7} parent=0 // pred_region
    _
  $region33: #{robust_block_forward.7} parent=0 // pred_fallthru
    _

// kernel: robust_block_forward.8
$region0: #{robust_block_forward.8}
  #allocation0 [shape = 'u32[]', space=smem, size = 0x4, offset = 0x4, fixed_abs, tag = 'smem constant byte address 0x4 - core index']
  #allocation1 [shape = 'u32[144,128]{1,0:T(1,128)}', space=vmem, size = 0x12000, scoped, tag = 'internal scratch']
  #allocation2 [shape = 'bf16[16,32]{1,0:T(16,128)(2,1)}', space=vmem, size = 0x1000, scoped, tag = 'scratch operand']
  %s0 = inlined_call_operand.vmem [shape: f32[16,32], index: 0, kind: input, shape index: {}]
  %s1 = inlined_call_operand.vmem [shape: f32[1,32], index: 1, kind: input, shape index: {}]
  %s2 = inlined_call_operand.vmem [shape: f32[1,32], index: 2, kind: input, shape index: {}]
  %s3 = inlined_call_operand.vmem [shape: bf16[32,128], index: 3, kind: input, shape index: {}]
  %s4 = inlined_call_operand.vmem [shape: f32[1,128], index: 4, kind: input, shape index: {}]
  %s5 = inlined_call_operand.vmem [shape: bf16[16,128], index: 5, kind: output, shape index: {}]
  %s6 = sld [smem:[#allocation0]]
  $region34: #{robust_block_forward.8} parent=0
    _
  %s8 = ssub.s32 1, %s6
  %s9 = scalar_select 0, %s8, %s6
  // Predicated region
  $region2: #{robust_block_forward.8} parent=0 // pred_check
    _
  $region3: #{robust_block_forward.8} parent=0 // pred_check_branch
    %11 = sbr.rel (0) target = $region5
  $region4: #{robust_block_forward.8} parent=0 // pred_region
    _
  $region5: #{robust_block_forward.8} parent=0 // pred_fallthru
    _
  // Predicated region
  $region6: #{robust_block_forward.8} parent=0 // pred_check
    _
  $region7: #{robust_block_forward.8} parent=0 // pred_check_branch
    %13 = sbr.rel (0) target = $region9
  $region8: #{robust_block_forward.8} parent=0 // pred_region
    _
  $region9: #{robust_block_forward.8} parent=0 // pred_fallthru
    _
  // Predicated region
  $region10: #{robust_block_forward.8} parent=0 // pred_check
    _
  $region11: #{robust_block_forward.8} parent=0 // pred_check_branch
    %15 = sbr.rel (0) target = $region13
  $region12: #{robust_block_forward.8} parent=0 // pred_region
    _
  $region13: #{robust_block_forward.8} parent=0 // pred_fallthru
    _
  // Predicated region
  $region14: #{robust_block_forward.8} parent=0 // pred_check
    _
  $region15: #{robust_block_forward.8} parent=0 // pred_check_branch
    %17 = sbr.rel (0) target = $region17
  $region16: #{robust_block_forward.8} parent=0 // pred_region
    _
  $region17: #{robust_block_forward.8} parent=0 // pred_fallthru
    _
  // Predicated region
  $region18: #{robust_block_forward.8} parent=0 // pred_check
    _
  $region19: #{robust_block_forward.8} parent=0 // pred_check_branch
    %19 = sbr.rel (0) target = $region21
  $region20: #{robust_block_forward.8} parent=0 // pred_region
    _
  $region21: #{robust_block_forward.8} parent=0 // pred_fallthru
    _
  %p21 = scmp.eq.s32.totalorder 0, 0
  // Predicated region
  $region22: #{robust_block_forward.8} parent=0 // pred_check
    %p22 = pneg %p21
  $region23: #{robust_block_forward.8} parent=0 // pred_check_branch
    %24 = sbr.rel (%p22) target = $region25
  $region24: #{robust_block_forward.8} parent=0 // pred_region
    %v25 = vld [vmem:[%s0] sm:$0xff]
    %v26 = vld [vmem:[%s0 + $0x8] sm:$0xff]
    %vm27 = vcmask 261120
    %v28 = vsel %vm27, %v25, 0.0
    %29 = vadd.xlane.f32.xlu0 %v28
    %v30 = vpop.xlane.xlu0 %29
    %v31 = vsel %vm27, %v26, 0.0
    %32 = vadd.xlane.f32.xlu0 %v31
    %v33 = vpop.xlane.xlu0 %32
    %v34 = vrcp.pop 32.0
    %v35 = vmul.f32 %v30, %v34
    %v36 = vmul.f32 %v33, %v34
    %v37 = vsub.f32 %v25, %v35
    %v38 = vsub.f32 %v26, %v36
    %v39 = vmul.f32 %v37, %v37
    %v40 = vmul.f32 %v38, %v38
    %v41 = vsel %vm27, %v39, 0.0
    %42 = vadd.xlane.f32.xlu0 %v41
    %v43 = vpop.xlane.xlu0 %42
    %v44 = vsel %vm27, %v40, 0.0
    %45 = vadd.xlane.f32.xlu0 %v44
    %v46 = vpop.xlane.xlu0 %45
    %v47 = vmul.f32 %v43, %v34
    %v48 = vmul.f32 %v46, %v34
    %v49 = vadd.f32 %v47, 1e-05
    %v50 = vadd.f32 %v48, 1e-05
    %v51 = vrsqrt.pop %v49
    %v52 = vrsqrt.pop %v50
    %v53 = vmul.f32 %v37, %v51
    %v54 = vmul.f32 %v38, %v52
    %v55 = vld [vmem:[%s1] sm:$0x1]
    %v57 = vlaneseq
    %v58 = vshrl.u32 %v57, 7
    %v59 = vsub.s32 0, %v58
    %v60 = vrot.slane %v55, %v59
    %v62 = vmul.f32 %v53, %v60
    %v63 = vmul.f32 %v54, %v60
    %v64 = vld [vmem:[%s2] sm:$0x1]
    %v66 = vlaneseq
    %v67 = vshrl.u32 %v66, 7
    %v68 = vsub.s32 0, %v67
    %v69 = vrot.slane %v64, %v68
    %v71 = vadd.f32 %v62, %v69
    %v72 = vadd.f32 %v63, %v69
    %v73 = vpack.c.bf16 %v72, %v71
    %74 = vst.msk [vmem:[#allocation2] sm:$0xff] %vm27, %v73
  $region25: #{robust_block_forward.8} parent=0 // pred_fallthru
    _
  %v75 = vld [vmem:[#allocation2] sm:$0xff]
  %v76 = vld [vmem:[%s3] sm:$0xf]
  %v77 = vld [vmem:[%s3 + $0x4] sm:$0xf]
  %v78 = vld [vmem:[%s3 + $0x8] sm:$0xf]
  %v79 = vld [vmem:[%s3 + $0xc] sm:$0xf]
  %v80 = vld [vmem:[%s4] sm:$0x1]
  %v82 = vlaneseq
  %v83 = vshrl.u32 %v82, 7
  %v84 = vsub.s32 0, %v83
  %v85 = vrot.slane %v80, %v84
  %v91 = vunpack.c.l.b16 %v76
  %v92 = vunpack.c.l.b16 %v77
  %v93 = vunpack.c.l.b16 %v78
  %v94 = vunpack.c.l.b16 %v79
  %v95 = vpack.c.b16 %v92, %v91
  %v96 = vpack.c.b16 %v94, %v93
  %vm99 = vcmask 261120
  %v101 = vsel %vm99, %v75, 0
  %103 = vmatprep.subr.bf16.mxu0 0
  %104 = vmatpush1.bf16.msra.mxu0 %v95
  %105 = vmatprep.subr.bf16.mxu0 0
  %106 = vmatpush1.bf16.msra.mxu0 %v96
  %107 = vmatprep.subr.bf16.mxu0 0
  %108 = vmatpush1.bf16.msra.mxu0 0
  %109 = vmatprep.subr.bf16.mxu0 0
  %110 = vmatpush1.bf16.msra.mxu0 0
  %111 = vmatprep.subr.bf16.mxu0 0
  %112 = vmatpush1.bf16.msra.mxu0 0
  %113 = vmatprep.subr.bf16.mxu0 0
  %114 = vmatpush1.bf16.msra.mxu0 0
  %115 = vmatprep.subr.bf16.mxu0 0
  %116 = vmatpush1.bf16.msra.mxu0 0
  %117 = vmatprep.subr.bf16.mxu0 0
  %118 = vmatpush1.bf16.msra.mxu0 0
  %119 = vmatprep.subr.bf16.mxu0 0
  %120 = vmatpush1.bf16.msra.mxu0 0
  %121 = vmatprep.subr.bf16.mxu0 0
  %122 = vmatpush1.bf16.msra.mxu0 0
  %123 = vmatprep.subr.bf16.mxu0 0
  %124 = vmatpush1.bf16.msra.mxu0 0
  %125 = vmatprep.subr.bf16.mxu0 0
  %126 = vmatpush1.bf16.msra.mxu0 0
  %127 = vmatprep.subr.bf16.mxu0 0
  %128 = vmatpush1.bf16.msra.mxu0 0
  %129 = vmatprep.subr.bf16.mxu0 0
  %130 = vmatpush1.bf16.msra.mxu0 0
  %131 = vmatprep.subr.bf16.mxu0 0
  %132 = vmatpush1.bf16.msra.mxu0 0
  %133 = vmatprep.subr.bf16.mxu0 0
  %134 = vmatpush1.bf16.msra.mxu0 0
  %135 = vmatprep.mubr.bf16.mxu0 0
  %136 = vmatmul.mubr.bf16.gmra.mrb[0].mxu0 %v101
  %v137 = vpop.f32.mrb[0].mxu0
  %v138 = vadd.f32 %v85, %v137
  %v139 = vpop.f32.mrb[0].mxu0
  %v140 = vpop.f32.mrb[0].mxu0
  %v141 = vadd.f32 %v85, %v140
  %v142 = vpop.f32.mrb[0].mxu0
  %143 = vdwg.mxu0
  %v144 = vmul.f32 %v138, 0.5
  %v145 = vmul.f32 %v141, 0.5
  %v146 = vmul.f32 %v138, 0.70710677
  %v147 = vmul.f32 %v141, 0.70710677
  %v148 = verf.f32.pop %v146
  %v149 = verf.f32.pop %v147
  %v150 = vadd.f32 %v148, 1.0
  %v151 = vadd.f32 %v149, 1.0
  %v152 = vmul.f32 %v144, %v150
  %v153 = vmul.f32 %v145, %v151
  %v154 = vpack.c.bf16 %v153, %v152
  %v156 = vunpack.c.l.b16 %v154
  %v157 = vunpack.c.h.b16 %v154
  %v158 = vpack.c.b16 %v156, %v156
  %v159 = vpack.c.b16 %v157, %v157
  %162 = vst [vmem:[%s5] sm:$0xf] %v158
  %163 = vst [vmem:[%s5 + $0x4] sm:$0xf] %v159
  // Predicated region
  $region26: #{robust_block_forward.8} parent=0 // pred_check
    _
  $region27: #{robust_block_forward.8} parent=0 // pred_check_branch
    %165 = sbr.rel (0) target = $region29
  $region28: #{robust_block_forward.8} parent=0 // pred_region
    _
  $region29: #{robust_block_forward.8} parent=0 // pred_fallthru
    _
  // Predicated region
  $region30: #{robust_block_forward.8} parent=0 // pred_check
    _
  $region31: #{robust_block_forward.8} parent=0 // pred_check_branch
    %167 = sbr.rel (0) target = $region33
  $region32: #{robust_block_forward.8} parent=0 // pred_region
    _
  $region33: #{robust_block_forward.8} parent=0 // pred_fallthru
    _

// kernel: robust_block_forward.6
$region0: #{robust_block_forward.6}
  #allocation0 [shape = 'u32[]', space=smem, size = 0x4, offset = 0x4, fixed_abs, tag = 'smem constant byte address 0x4 - core index']
  #allocation1 [shape = 'u32[144,128]{1,0:T(1,128)}', space=vmem, size = 0x12000, scoped, tag = 'internal scratch']
  %s0 = inlined_call_operand.vmem [shape: bf16[2,4,8,24], index: 0, kind: input, shape index: {}]
  %s1 = inlined_call_operand.vmem [shape: bf16[2,4,8,8], index: 1, kind: output, shape index: {}]
  %s2 = sld [smem:[#allocation0]]
  $region37: #{robust_block_forward.6} parent=0
    _
  %s4 = ssub.s32 1, %s2
  %s5 = scalar_select 0, %s4, %s2
  loop: start=0, step=1, limit=10
  $region2: #{robust_block_forward.6} parent=0 // loop_pre_header
    _
  $region3: #{robust_block_forward.6} parent=0 // loop_header
    %s7 = sphi 0, %s11
    %p8 = scmp.ge.s32.totalorder %s7, 10
    %s14 = sphi 0, %s26
    %s15 = sphi 0, %s22
    %s16 = sphi 0, %s14
    %s17 = sphi 0, %s15
    %s18 = sphi 0, %s16
    %s19 = sphi 0, %s17
    %s31 = sphi 0, %s33
    %s34 = sphi 0, %s31
    %s35 = sphi 0, %s34
    %s51 = sphi 0, %s35
    %s59 = sphi 0, %s61
    %s62 = sphi 0, %s59
    %s63 = sphi 0, %s62
    %s79 = sphi 0, %s63
  $region4: #{robust_block_forward.6} parent=0 // loop_header_branch
    %10 = sbr.rel (%p8) target = $region8
  $region5: #{robust_block_forward.6} parent=0 // loop_body
    %s12 = ssub.s32 %s7, 1
    %s13 = ssub.s32 %s7, 2
    %s20 = sadd.s32 1, %s15
    %p21 = scmp.ge.s32.totalorder %s20, 4
    %s22 = scalar_select %p21, 0, %s20
    %s23 = sadd.s32 1, %s14
    %s24 = scalar_select %p21, %s23, %s14
    %p25 = scmp.ge.s32.totalorder %s24, 2
    %s26 = scalar_select %p25, 0, %s24
    %s27 = ssub.s32 %s14, %s26
    %s28 = ssub.s32 %s15, %s22
    %s29 = sor.u32 %s27, %s28
    %p30 = scmp.eq.s32.totalorder %s29, 0
    %s32 = sadd.s32 %s31, 1
    %s33 = scalar_select %p30, %s31, %s32
    %p36 = pneg %p30
    %p37 = scmp.eq.s32.totalorder %s7, 7
    %p38 = por %p36, %p37
    %p39 = scmp.ne.s32.totalorder %s31, %s34
    %p40 = scmp.eq.s32.totalorder %s7, 0
    %p41 = por %p39, %p40
    %p42 = scmp.ne.s32.totalorder %s31, %s34
    %p43 = scmp.eq.s32.totalorder %s12, 7
    %p44 = por %p42, %p43
    %p45 = scmp.ne.s32.totalorder %s34, %s35
    %p46 = scmp.eq.s32.totalorder %s12, 0
    %p47 = por %p45, %p46
    %p48 = scmp.ne.s32.totalorder %s34, %s35
    %p49 = scmp.eq.s32.totalorder %s13, 7
    %p50 = por %p48, %p49
    %p52 = scmp.ne.s32.totalorder %s35, %s51
    %p53 = scmp.eq.s32.totalorder %s13, 0
    %p54 = por %p52, %p53
    %s55 = ssub.s32 %s14, %s26
    %s56 = ssub.s32 %s15, %s22
    %s57 = sor.u32 %s55, %s56
    %p58 = scmp.eq.s32.totalorder %s57, 0
    %s60 = sadd.s32 %s59, 1
    %s61 = scalar_select %p58, %s59, %s60
    %p64 = pneg %p58
    %p65 = scmp.eq.s32.totalorder %s7, 7
    %p66 = por %p64, %p65
    %p67 = scmp.ne.s32.totalorder %s59, %s62
    %p68 = scmp.eq.s32.totalorder %s7, 0
    %p69 = por %p67, %p68
    %p70 = scmp.ne.s32.totalorder %s59, %s62
    %p71 = scmp.eq.s32.totalorder %s12, 7
    %p72 = por %p70, %p71
    %p73 = scmp.ne.s32.totalorder %s62, %s63
    %p74 = scmp.eq.s32.totalorder %s12, 0
    %p75 = por %p73, %p74
    %p76 = scmp.ne.s32.totalorder %s62, %s63
    %p77 = scmp.eq.s32.totalorder %s13, 7
    %p78 = por %p76, %p77
    %p80 = scmp.ne.s32.totalorder %s63, %s79
    %p81 = scmp.eq.s32.totalorder %s13, 0
    %p82 = por %p80, %p81
    %p83 = scmp.le.s32.totalorder 1, %s7
    %p84 = scmp.lt.s32.totalorder %s7, 9
    %p85 = pnand %p83, %p84
    %p86 = pneg %p85
    // Predicated region
    $region9: #{robust_block_forward.6} parent=5 // pred_check
      _
    $region10: #{robust_block_forward.6} parent=5 // pred_check_branch
      %88 = sbr.rel (%p85) target = $region12
    $region11: #{robust_block_forward.6} parent=5 // pred_region
      %s89 = ssub.s32 %s7, 1
    $region12: #{robust_block_forward.6} parent=5 // pred_fallthru
      _
    %p90 = scmp.lt.s32.totalorder %s7, 8
    // Predicated region
    $region13: #{robust_block_forward.6} parent=5 // pred_check
      %p91 = pneg %p90
    $region14: #{robust_block_forward.6} parent=5 // pred_check_branch
      %93 = sbr.rel (%p91) target = $region16
    $region15: #{robust_block_forward.6} parent=5 // pred_region
      // Predicated region
      $region17: #{robust_block_forward.6} parent=15 // pred_check
        %p94 = pneg %p41
      $region18: #{robust_block_forward.6} parent=15 // pred_check_branch
        %96 = sbr.rel (%p94) target = $region20
      $region19: #{robust_block_forward.6} parent=15 // pred_region
        %p97 = scmp.lt.s32.totalorder %s14, 1
        %s98 = scalar_select %p97, %s14, 1
        %p99 = scmp.lt.s32.totalorder %s15, 3
        %s100 = scalar_select %p99, %s15, 3
        %s101 = smul.addr %s98, 4
        %s102 = sadd.s32 %s100, %s101
        %s103 = smul.addr %s102, 4
        %s104 = scalar_lea.vmem %s0, %s103
      $region20: #{robust_block_forward.6} parent=15 // pred_fallthru
        _
    $region16: #{robust_block_forward.6} parent=5 // pred_fallthru
      _
    %p105 = scmp.le.s32.totalorder 1, %s7
    %p106 = scmp.lt.s32.totalorder %s7, 9
    %p107 = pnand %p105, %p106
    %p108 = pneg %p107
    // Predicated region
    $region21: #{robust_block_forward.6} parent=5 // pred_check
      _
    $region22: #{robust_block_forward.6} parent=5 // pred_check_branch
      %110 = sbr.rel (%p107) target = $region24
    $region23: #{robust_block_forward.6} parent=5 // pred_region
      %s111 = ssub.s32 %s7, 1
      %p112 = scmp.lt.s32.totalorder %s16, 1
      %s113 = scalar_select %p112, %s16, 1
      %p114 = scmp.lt.s32.totalorder %s17, 3
      %s115 = scalar_select %p114, %s17, 3
      %s116 = smul.addr %s113, 4
      %s117 = sadd.s32 %s115, %s116
      %s118 = smul.addr %s117, 4
      %s119 = scalar_lea.vmem %s0, %s118
      %p120 = pneg %p47
      %p121 = pneg %p44
      %p122 = pneg %p75
      %p123 = pneg %p72
      %p124 = scmp.lt.s32.totalorder %s16, 1
      %s125 = scalar_select %p124, %s16, 1
      %p126 = scmp.lt.s32.totalorder %s17, 3
      %s127 = scalar_select %p126, %s17, 3
      %s128 = smul.addr %s125, 4
      %s129 = sadd.s32 %s127, %s128
      %s130 = smul.addr %s129, 4
      %s131 = scalar_lea.vmem %s1, %s130
      %p132 = scmp.lt.s32.totalorder %s16, 1
      %s133 = scalar_select %p132, %s16, 1
      %p134 = scmp.lt.s32.totalorder %s17, 3
      %s135 = scalar_select %p134, %s17, 3
      %s136 = smul.addr %s133, 4
      %s137 = sadd.s32 %s135, %s136
      %s138 = smul.addr %s137, 4
      %s139 = scalar_lea.vmem %s0, %s138
      %p140 = scmp.lt.s32.totalorder %s16, 1
      %s141 = scalar_select %p140, %s16, 1
      %p142 = scmp.lt.s32.totalorder %s17, 3
      %s143 = scalar_select %p142, %s17, 3
      %s144 = smul.addr %s141, 4
      %s145 = sadd.s32 %s143, %s144
      %s146 = smul.addr %s145, 4
      %s147 = scalar_lea.vmem %s1, %s146
      %v149 = vld [vmem:[%s139] sm:$0xf]
      %v150 = vunpack.c.l.bf16 %v149
      %v151 = vmul.f32 %v150, %v150
      %153 = vrot.lane.b32.xlu0 %v151, 120
      %v154 = vpop.permute.xlu0 %153
      %vm156 = vcmask 64512
      %v157 = vsel %vm156, %v154, 0.0
      %158 = vadd.xlane.f32.xlu0 %v157
      %v159 = vpop.xlane.xlu0 %158
      %v160 = vmax.f32 %v159, 1e-24
      %v161 = vrsqrt.pop %v160
      %v162 = vmul.f32 %v150, %v161
      %v163 = vpack.c.bf16 %v162, %v162
      %165 = vrot.lane.b32.xlu0 %v163, 120
      %v166 = vpop.permute.xlu0 %165
      %v168 = vsel %vm156, %v166, 0
      %170 = vmatprep.subr.bf16.mxu0 0
      %171 = vmatpush1.bf16.xpose.msra.mxu0 %v168
      %172 = vmatprep.subr.bf16.mxu0 0
      %173 = vmatpush1.bf16.xpose.msra.mxu0 0
      %174 = vmatprep.subr.bf16.mxu0 0
      %175 = vmatpush1.bf16.xpose.msra.mxu0 0
      %176 = vmatprep.subr.bf16.mxu0 0
      %177 = vmatpush1.bf16.xpose.msra.mxu0 0
      %178 = vmatprep.subr.bf16.mxu0 0
      %179 = vmatpush1.bf16.xpose.msra.mxu0 0
      %180 = vmatprep.subr.bf16.mxu0 0
      %181 = vmatpush1.bf16.xpose.msra.mxu0 0
      %182 = vmatprep.subr.bf16.mxu0 0
      %183 = vmatpush1.bf16.xpose.msra.mxu0 0
      %184 = vmatprep.subr.bf16.mxu0 0
      %185 = vmatpush1.bf16.xpose.msra.mxu0 0
      %186 = vmatprep.subr.bf16.mxu0 0
      %187 = vmatpush1.bf16.xpose.msra.mxu0 0
      %188 = vmatprep.subr.bf16.mxu0 0
      %189 = vmatpush1.bf16.xpose.msra.mxu0 0
      %190 = vmatprep.subr.bf16.mxu0 0
      %191 = vmatpush1.bf16.xpose.msra.mxu0 0
      %192 = vmatprep.subr.bf16.mxu0 0
      %193 = vmatpush1.bf16.xpose.msra.mxu0 0
      %194 = vmatprep.subr.bf16.mxu0 0
      %195 = vmatpush1.bf16.xpose.msra.mxu0 0
      %196 = vmatprep.subr.bf16.mxu0 0
      %197 = vmatpush1.bf16.xpose.msra.mxu0 0
      %198 = vmatprep.subr.bf16.mxu0 0
      %199 = vmatpush1.bf16.xpose.msra.mxu0 0
      %200 = vmatprep.subr.bf16.mxu0 0
      %201 = vmatpush1.bf16.xpose.msra.mxu0 0
      %202 = vmatprep.mubr.bf16.mxu0 0
      %203 = vmatmul.mubr.bf16.gmra.mrb[0].mxu0 %v168
      %v204 = vpop.f32.mrb[0].mxu0
      %v205 = vadd.f32 0.0, %v204
      %v206 = vpop.f32.mrb[0].mxu0
      %v207 = vpop.f32.mrb[0].mxu0
      %v208 = vpop.f32.mrb[0].mxu0
      %209 = vdwg.mxu0
      %v210 = vmul.f32 %v205, 2.0
      %v211 = vsub.f32 2.0, %v210
      %v212 = vmax.f32 %v211, 0.0
      %v213 = vmul.f32 %v212, -0.35355338
      %v214 = vmul.f32 %v213, 1.442695
      %v215 = vpow.pop %v214
      %216 = vrot.lane.b32.xlu0 %v151, 112
      %v217 = vpop.permute.xlu0 %216
      %v219 = vsel %vm156, %v217, 0.0
      %220 = vadd.xlane.f32.xlu0 %v219
      %v221 = vpop.xlane.xlu0 %220
      %v223 = vsel %vm156, 1.0, 0
      %v225 = vsel %vm156, %v217, 0
      %227 = vmatprep.subr.mxu0 0.0
      %228 = vmatpush1.xpose.msra.mxu0 %v225
      %229 = vmatprep.subr.mxu0 0.0
      %230 = vmatpush1.xpose.msra.mxu0 0.0
      %231 = vmatprep.subr.mxu0 0.0
      %232 = vmatpush1.xpose.msra.mxu0 0.0
      %233 = vmatprep.subr.mxu0 0.0
      %234 = vmatpush1.xpose.msra.mxu0 0.0
      %235 = vmatprep.subr.mxu0 0.0
      %236 = vmatpush1.xpose.msra.mxu0 0.0
      %237 = vmatprep.subr.mxu0 0.0
      %238 = vmatpush1.xpose.msra.mxu0 0.0
      %239 = vmatprep.subr.mxu0 0.0
      %240 = vmatpush1.xpose.msra.mxu0 0.0
      %241 = vmatprep.subr.mxu0 0.0
      %242 = vmatpush1.xpose.msra.mxu0 0.0
      %243 = vmatprep.subr.mxu0 0.0
      %244 = vmatpush1.xpose.msra.mxu0 0.0
      %245 = vmatprep.subr.mxu0 0.0
      %246 = vmatpush1.xpose.msra.mxu0 0.0
      %247 = vmatprep.subr.mxu0 0.0
      %248 = vmatpush1.xpose.msra.mxu0 0.0
      %249 = vmatprep.subr.mxu0 0.0
      %250 = vmatpush1.xpose.msra.mxu0 0.0
      %251 = vmatprep.subr.mxu0 0.0
      %252 = vmatpush1.xpose.msra.mxu0 0.0
      %253 = vmatprep.subr.mxu0 0.0
      %254 = vmatpush1.xpose.msra.mxu0 0.0
      %255 = vmatprep.subr.mxu0 0.0
      %256 = vmatpush1.xpose.msra.mxu0 0.0
      %257 = vmatprep.subr.mxu0 0.0
      %258 = vmatpush1.xpose.msra.mxu0 0.0
      %259 = vmatprep.subr.mxu0 0.0
      %260 = vmatpush1.xpose.msra.mxu0 0.0
      %261 = vmatprep.subr.mxu0 0.0
      %262 = vmatpush1.xpose.msra.mxu0 0.0
      %263 = vmatprep.subr.mxu0 0.0
      %264 = vmatpush1.xpose.msra.mxu0 0.0
      %265 = vmatprep.subr.mxu0 0.0
      %266 = vmatpush1.xpose.msra.mxu0 0.0
      %267 = vmatprep.subr.mxu0 0.0
      %268 = vmatpush1.xpose.msra.mxu0 0.0
      %269 = vmatprep.subr.mxu0 0.0
      %270 = vmatpush1.xpose.msra.mxu0 0.0
      %271 = vmatprep.subr.mxu0 0.0
      %272 = vmatpush1.xpose.msra.mxu0 0.0
      %273 = vmatprep.subr.mxu0 0.0
      %274 = vmatpush1.xpose.msra.mxu0 0.0
      %275 = vmatprep.subr.mxu0 0.0
      %276 = vmatpush1.xpose.msra.mxu0 0.0
      %277 = vmatprep.subr.mxu0 0.0
      %278 = vmatpush1.xpose.msra.mxu0 0.0
      %279 = vmatprep.subr.mxu0 0.0
      %280 = vmatpush1.xpose.msra.mxu0 0.0
      %281 = vmatprep.subr.mxu0 0.0
      %282 = vmatpush1.xpose.msra.mxu0 0.0
      %283 = vmatprep.subr.mxu0 0.0
      %284 = vmatpush1.xpose.msra.mxu0 0.0
      %285 = vmatprep.subr.mxu0 0.0
      %286 = vmatpush1.xpose.msra.mxu0 0.0
      %287 = vmatprep.subr.mxu0 0.0
      %288 = vmatpush1.xpose.msra.mxu0 0.0
      %289 = vmatprep.subr.mxu0 0.0
      %290 = vmatpush1.xpose.msra.mxu0 0.0
      %291 = vmatprep.mubr.f32.mxu0 0.0
      %292 = vmatmul.mubr.f32.gmra.mrb[0].mxu0 %v223
      %v293 = vpop.f32.mrb[0].mxu0
      %v294 = vadd.f32 0.0, %v293
      %v295 = vpop.f32.mrb[0].mxu0
      %296 = vdwg.mxu0
      %v298 = vunpack.c.l.b16 %v149
      %v299 = vpack.c.b16 %v298, %v298
      %300 = vrot.lane.b32.xlu0 %v299, 112
      %v301 = vpop.permute.xlu0 %300
      %v303 = vsel %vm156, %v301, 0
      %305 = vmatprep.subr.bf16.mxu0 0
      %306 = vmatpush1.bf16.xpose.msra.mxu0 %v303
      %307 = vmatprep.subr.bf16.mxu0 0
      %308 = vmatpush1.bf16.xpose.msra.mxu0 0
      %309 = vmatprep.subr.bf16.mxu0 0
      %310 = vmatpush1.bf16.xpose.msra.mxu0 0
      %311 = vmatprep.subr.bf16.mxu0 0
      %312 = vmatpush1.bf16.xpose.msra.mxu0 0
      %313 = vmatprep.subr.bf16.mxu0 0
      %314 = vmatpush1.bf16.xpose.msra.mxu0 0
      %315 = vmatprep.subr.bf16.mxu0 0
      %316 = vmatpush1.bf16.xpose.msra.mxu0 0
      %317 = vmatprep.subr.bf16.mxu0 0
      %318 = vmatpush1.bf16.xpose.msra.mxu0 0
      %319 = vmatprep.subr.bf16.mxu0 0
      %320 = vmatpush1.bf16.xpose.msra.mxu0 0
      %321 = vmatprep.subr.bf16.mxu0 0
      %322 = vmatpush1.bf16.xpose.msra.mxu0 0
      %323 = vmatprep.subr.bf16.mxu0 0
      %324 = vmatpush1.bf16.xpose.msra.mxu0 0
      %325 = vmatprep.subr.bf16.mxu0 0
      %326 = vmatpush1.bf16.xpose.msra.mxu0 0
      %327 = vmatprep.subr.bf16.mxu0 0
      %328 = vmatpush1.bf16.xpose.msra.mxu0 0
      %329 = vmatprep.subr.bf16.mxu0 0
      %330 = vmatpush1.bf16.xpose.msra.mxu0 0
      %331 = vmatprep.subr.bf16.mxu0 0
      %332 = vmatpush1.bf16.xpose.msra.mxu0 0
      %333 = vmatprep.subr.bf16.mxu0 0
      %334 = vmatpush1.bf16.xpose.msra.mxu0 0
      %335 = vmatprep.subr.bf16.mxu0 0
      %336 = vmatpush1.bf16.xpose.msra.mxu0 0
      %337 = vmatprep.mubr.bf16.mxu0 0
      %338 = vmatmul.mubr.bf16.gmra.mrb[0].mxu0 %v303
      %v339 = vpop.f32.mrb[0].mxu0
      %v340 = vadd.f32 0.0, %v339
      %v341 = vpop.f32.mrb[0].mxu0
      %v342 = vpop.f32.mrb[0].mxu0
      %v343 = vpop.f32.mrb[0].mxu0
      %344 = vdwg.mxu0
      %v345 = vlaneseq
      %v346 = vshrl.u32 %v345, 7
      %v347 = vsub.s32 0, %v346
      %v348 = vrot.slane %v294, %v347
      %v349 = vadd.f32 %v221, %v348
      %v350 = vmul.f32 %v340, 2.0
      %v351 = vsub.f32 %v349, %v350
      %v352 = vmax.f32 %v351, 0.0
      %v353 = vmul.f32 %v352, -0.35355338
      %v354 = vmul.f32 %v353, 1.442695
      %v355 = vpow.pop %v354
      %v356 = vmul.f32 %v215, %v355
      %v357 = vsel %vm156, %v356, 0.0
      %v358 = vrot.slane %v357, 4
      %v359 = vadd.f32 %v357, %v358
      %v360 = vrot.slane %v359, 2
      %v361 = vadd.f32 %v359, %v360
      %v362 = vrot.slane %v361, 1
      %v363 = vadd.f32 %v361, %v362
      %v364 = vmul.f32 %v363, 0.125
      %v365 = vsel %vm156, %v364, 0.0
      %366 = vadd.xlane.f32.xlu0 %v365
      %v367 = vpop.xlane.xlu0 %366
      %v368 = vmul.f32 %v367, 0.125
      %v369 = vadd.f32 %v364, 1.0
      %v370 = vadd.f32 %v369, %v368
      %v371 = vrsqrt.pop %v370
      %v372 = vmul.f32 %v370, %v371
      %vm373 = vcmp.eq.f32.partialorder %v370, inf
      %v374 = vsel %vm373, %v370, %v372
      %vm375 = vcmp.eq.f32.partialorder %v370, 0.0
      %v376 = vand.u32 %v370, 2147483648
      %v377 = vsel %vm375, %v376, %v374
      %vm378 = vcmp.le.f32.partialorder %v377, 0.2
      %v379 = vrcp.pop %v377
      %v380 = vmul.f32 0.2, %v379
      %v381 = vsel %vm378, 1.0, %v380
      %v382 = vlog2.pop %v381
      %v383 = vmul.f32 %v382, 0.6931472
      %v384 = vsel %vm156, %v383, -inf
      %385 = vmax.xlane.f32.xlu0 %v384
      %v386 = vpop.xlane.xlu0 %385
      %v387 = vsub.f32 %v383, %v386
      %v388 = vmul.f32 %v387, 1.442695
      %v389 = vpow.pop %v388
      %v390 = vsel %vm156, %v389, 0.0
      %391 = vadd.xlane.f32.xlu0 %v390
      %v392 = vpop.xlane.xlu0 %391
      %v393 = vlog2.pop %v392
      %v394 = vmul.f32 %v393, 0.6931472
      %v395 = vadd.f32 %v386, %v394
      %v396 = vsub.f32 %v383, %v395
      %v397 = vsel %vm156, %v215, 0.0
      %v398 = vrot.slane %v397, 4
      %v399 = vadd.f32 %v397, %v398
      %v400 = vrot.slane %v399, 2
      %v401 = vadd.f32 %v399, %v400
      %v402 = vrot.slane %v401, 1
      %v403 = vadd.f32 %v401, %v402
      %v404 = vmul.f32 %v403, 0.125
      %v405 = vsel %vm156, %v404, 0.0
      %406 = vadd.xlane.f32.xlu0 %v405
      %v407 = vpop.xlane.xlu0 %406
      %v408 = vmul.f32 %v407, 0.125
      %v409 = vadd.f32 %v404, 1.0
      %v410 = vadd.f32 %v409, %v408
      %v411 = vrsqrt.pop %v410
      %v412 = vmul.f32 %v410, %v411
      %vm413 = vcmp.eq.f32.partialorder %v410, inf
      %v414 = vsel %vm413, %v410, %v412
      %vm415 = vcmp.eq.f32.partialorder %v410, 0.0
      %v416 = vand.u32 %v410, 2147483648
      %v417 = vsel %vm415, %v416, %v414
      %vm418 = vcmp.le.f32.partialorder %v417, 0.2
      %v419 = vrcp.pop %v417
      %v420 = vmul.f32 0.2, %v419
      %v421 = vsel %vm418, 1.0, %v420
      %v422 = vlog2.pop %v421
      %v423 = vmul.f32 %v422, 0.6931472
      %v424 = vsel %vm156, %v423, -inf
      %425 = vmax.xlane.f32.xlu0 %v424
      %v426 = vpop.xlane.xlu0 %425
      %v427 = vsub.f32 %v423, %v426
      %v428 = vmul.f32 %v427, 1.442695
      %v429 = vpow.pop %v428
      %v430 = vsel %vm156, %v429, 0.0
      %431 = vadd.xlane.f32.xlu0 %v430
      %v432 = vpop.xlane.xlu0 %431
      %v433 = vlog2.pop %v432
      %v434 = vmul.f32 %v433, 0.6931472
      %v435 = vadd.f32 %v426, %v434
      %v436 = vsub.f32 %v423, %v435
      %v437 = vsub.f32 %v396, %v436
      %v438 = vmul.f32 %v437, 1.442695
      %v439 = vpow.pop %v438
      %v440 = vsel %vm156, %v151, 0.0
      %441 = vadd.xlane.f32.xlu0 %v440
      %v442 = vpop.xlane.xlu0 %441
      %v444 = vsel %vm156, %v149, 0
      %446 = vmatprep.subr.bf16.mxu0 0
      %447 = vmatpush1.bf16.xpose.msra.mxu0 %v168
      %448 = vmatprep.subr.bf16.mxu0 0
      %449 = vmatpush1.bf16.xpose.msra.mxu0 0
      %450 = vmatprep.subr.bf16.mxu0 0
      %451 = vmatpush1.bf16.xpose.msra.mxu0 0
      %452 = vmatprep.subr.bf16.mxu0 0
      %453 = vmatpush1.bf16.xpose.msra.mxu0 0
      %454 = vmatprep.subr.bf16.mxu0 0
      %455 = vmatpush1.bf16.xpose.msra.mxu0 0
      %456 = vmatprep.subr.bf16.mxu0 0
      %457 = vmatpush1.bf16.xpose.msra.mxu0 0
      %458 = vmatprep.subr.bf16.mxu0 0
      %459 = vmatpush1.bf16.xpose.msra.mxu0 0
      %460 = vmatprep.subr.bf16.mxu0 0
      %461 = vmatpush1.bf16.xpose.msra.mxu0 0
      %462 = vmatprep.subr.bf16.mxu0 0
      %463 = vmatpush1.bf16.xpose.msra.mxu0 0
      %464 = vmatprep.subr.bf16.mxu0 0
      %465 = vmatpush1.bf16.xpose.msra.mxu0 0
      %466 = vmatprep.subr.bf16.mxu0 0
      %467 = vmatpush1.bf16.xpose.msra.mxu0 0
      %468 = vmatprep.subr.bf16.mxu0 0
      %469 = vmatpush1.bf16.xpose.msra.mxu0 0
      %470 = vmatprep.subr.bf16.mxu0 0
      %471 = vmatpush1.bf16.xpose.msra.mxu0 0
      %472 = vmatprep.subr.bf16.mxu0 0
      %473 = vmatpush1.bf16.xpose.msra.mxu0 0
      %474 = vmatprep.subr.bf16.mxu0 0
      %475 = vmatpush1.bf16.xpose.msra.mxu0 0
      %476 = vmatprep.subr.bf16.mxu0 0
      %477 = vmatpush1.bf16.xpose.msra.mxu0 0
      %478 = vmatprep.mubr.bf16.mxu0 0
      %479 = vmatmul.mubr.bf16.gmra.mrb[0].mxu0 %v444
      %v480 = vpop.f32.mrb[0].mxu0
      %v481 = vadd.f32 0.0, %v480
      %v482 = vpop.f32.mrb[0].mxu0
      %v483 = vpop.f32.mrb[0].mxu0
      %v484 = vpop.f32.mrb[0].mxu0
      %485 = vdwg.mxu0
      %v486 = vadd.f32 %v442, 1.0
      %v487 = vmul.f32 %v481, 2.0
      %v488 = vsub.f32 %v486, %v487
      %v489 = vmax.f32 %v488, 0.0
      %v490 = vmul.f32 %v489, -0.35355338
      %v491 = vadd.f32 %v436, %v490
      %v492 = vsel %vm156, %v491, -inf
      %493 = vmax.xlane.f32.xlu0 %v492
      %v494 = vpop.xlane.xlu0 %493
      %v495 = vsub.f32 %v491, %v494
      %v496 = vmul.f32 %v495, 1.442695
      %v497 = vpow.pop %v496
      %v498 = vsel %vm156, %v497, 0.0
      %499 = vadd.xlane.f32.xlu0 %v498
      %v500 = vpop.xlane.xlu0 %499
      %v501 = vmul.f32 %v497, %v439
      %v502 = vrcp.pop %v500
      %v503 = vmul.f32 %v501, %v502
      %v504 = vpack.c.bf16 %v503, %v503
      %v506 = vsel %vm156, %v504, 0
      %vm508 = vcmask 1043456
      %v509 = vsel %vm508, %v301, 0
      %511 = vmatprep.subr.bf16.mxu0 0
      %512 = vmatpush1.bf16.msra.mxu0 %v509
      %513 = vmatprep.subr.bf16.mxu0 0
      %514 = vmatpush1.bf16.msra.mxu0 0
      %515 = vmatprep.subr.bf16.mxu0 0
      %516 = vmatpush1.bf16.msra.mxu0 0
      %517 = vmatprep.subr.bf16.mxu0 0
      %518 = vmatpush1.bf16.msra.mxu0 0
      %519 = vmatprep.subr.bf16.mxu0 0
      %520 = vmatpush1.bf16.msra.mxu0 0
      %521 = vmatprep.subr.bf16.mxu0 0
      %522 = vmatpush1.bf16.msra.mxu0 0
      %523 = vmatprep.subr.bf16.mxu0 0
      %524 = vmatpush1.bf16.msra.mxu0 0
      %525 = vmatprep.subr.bf16.mxu0 0
      %526 = vmatpush1.bf16.msra.mxu0 0
      %527 = vmatprep.subr.bf16.mxu0 0
      %528 = vmatpush1.bf16.msra.mxu0 0
      %529 = vmatprep.subr.bf16.mxu0 0
      %530 = vmatpush1.bf16.msra.mxu0 0
      %531 = vmatprep.subr.bf16.mxu0 0
      %532 = vmatpush1.bf16.msra.mxu0 0
      %533 = vmatprep.subr.bf16.mxu0 0
      %534 = vmatpush1.bf16.msra.mxu0 0
      %535 = vmatprep.subr.bf16.mxu0 0
      %536 = vmatpush1.bf16.msra.mxu0 0
      %537 = vmatprep.subr.bf16.mxu0 0
      %538 = vmatpush1.bf16.msra.mxu0 0
      %539 = vmatprep.subr.bf16.mxu0 0
      %540 = vmatpush1.bf16.msra.mxu0 0
      %541 = vmatprep.subr.bf16.mxu0 0
      %542 = vmatpush1.bf16.msra.mxu0 0
      %543 = vmatprep.mubr.bf16.mxu0 0
      %544 = vmatmul.mubr.bf16.gmra.mrb[0].mxu0 %v506
      %v545 = vpop.f32.mrb[0].mxu0
      %v546 = vadd.f32 0.0, %v545
      %v547 = vpop.f32.mrb[0].mxu0
      %v548 = vpop.f32.mrb[0].mxu0
      %v549 = vpop.f32.mrb[0].mxu0
      %550 = vdwg.mxu0
      %v551 = vpack.c.bf16 %v546, %v546
      %vm552 = vcmask 60416
      %553 = vst.msk [vmem:[%s147] sm:$0xf] %vm552, %v551
      %p554 = scmp.lt.s32.totalorder %s16, 1
      %s555 = scalar_select %p554, %s16, 1
      %p556 = scmp.lt.s32.totalorder %s17, 3
      %s557 = scalar_select %p556, %s17, 3
      %s558 = smul.addr %s555, 4
      %s559 = sadd.s32 %s557, %s558
      %s560 = smul.addr %s559, 4
      %s561 = scalar_lea.vmem %s1, %s560
      // Predicated region
      $region25: #{robust_block_forward.6} parent=23 // pred_check
        %p562 = pneg %p72
      $region26: #{robust_block_forward.6} parent=23 // pred_check_branch
        %564 = sbr.rel (%p562) target = $region28
      $region27: #{robust_block_forward.6} parent=23 // pred_region
        _
      $region28: #{robust_block_forward.6} parent=23 // pred_fallthru
        _
    $region24: #{robust_block_forward.6} parent=5 // pred_fallthru
      _
    %p565 = scmp.le.s32.totalorder 2, %s7
    // Predicated region
    $region29: #{robust_block_forward.6} parent=5 // pred_check
      %p566 = pneg %p565
    $region30: #{robust_block_forward.6} parent=5 // pred_check_branch
      %568 = sbr.rel (%p566) target = $region32
    $region31: #{robust_block_forward.6} parent=5 // pred_region
      %s569 = ssub.s32 %s7, 2
      // Predicated region
      $region33: #{robust_block_forward.6} parent=31 // pred_check
        %p570 = pneg %p78
      $region34: #{robust_block_forward.6} parent=31 // pred_check_branch
        %572 = sbr.rel (%p570) target = $region36
      $region35: #{robust_block_forward.6} parent=31 // pred_region
        %p573 = scmp.lt.s32.totalorder %s18, 1
        %s574 = scalar_select %p573, %s18, 1
        %p575 = scmp.lt.s32.totalorder %s19, 3
        %s576 = scalar_select %p575, %s19, 3
        %s577 = smul.addr %s574, 4
        %s578 = sadd.s32 %s576, %s577
        %s579 = smul.addr %s578, 4
        %s580 = scalar_lea.vmem %s1, %s579
      $region36: #{robust_block_forward.6} parent=31 // pred_fallthru
        _
    $region32: #{robust_block_forward.6} parent=5 // pred_fallthru
      _
  $region6: #{robust_block_forward.6} parent=0 // loop_footer
    %s11 = sadd.s32 1, %s7
  $region7: #{robust_block_forward.6} parent=0 // loop_footer_branch
    %6 = sbr.rel target = $region3
  $region8: #{robust_block_forward.6} parent=0 // loop_exit
    _

// kernel: robust_block_forward.9
$region0: #{robust_block_forward.9}
  #allocation0 [shape = 'u32[]', space=smem, size = 0x4, offset = 0x4, fixed_abs, tag = 'smem constant byte address 0x4 - core index']
  #allocation1 [shape = 'u32[144,128]{1,0:T(1,128)}', space=vmem, size = 0x12000, scoped, tag = 'internal scratch']
  #allocation2 [shape = 'f32[16,32]{1,0:T(8,128)}', space=vmem, size = 0x2000, scoped, tag = 'scratch operand']
  %s0 = inlined_call_operand.vmem [shape: bf16[16,128], index: 0, kind: input, shape index: {}]
  %s1 = inlined_call_operand.vmem [shape: bf16[128,32], index: 1, kind: input, shape index: {}]
  %s2 = inlined_call_operand.vmem [shape: f32[1,32], index: 2, kind: input, shape index: {}]
  %s3 = inlined_call_operand.vmem [shape: f32[16,32], index: 3, kind: input, shape index: {}]
  %s4 = inlined_call_operand.hbm [shape: f32[16,32], index: 4, kind: output, shape index: {}]
  %s5 = sld [smem:[#allocation0]]
  $region34: #{robust_block_forward.9} parent=0
    _
  %s7 = ssub.s32 1, %s5
  %s8 = scalar_select 0, %s7, %s5
  $region1: #{robust_block_forward.9} parent=0
    #allocation3 [shape = 'u8[8192]{0}', space=vmem, size = 0x2000, scoped, tag = 'output window, operand 0, single buffered']
    #allocation4 [shape = 's32[1]{0}', space=sflag, size = 0x4, scoped, tag = 'scoped memory for robust_block_forward.9']
    %9 = vsyncpa [#allocation4], 0
    // Predicated region
    $region2: #{robust_block_forward.9} parent=1 // pred_check
      _
    $region3: #{robust_block_forward.9} parent=1 // pred_check_branch
      %11 = sbr.rel (0) target = $region5
    $region4: #{robust_block_forward.9} parent=1 // pred_region
      _
    $region5: #{robust_block_forward.9} parent=1 // pred_fallthru
      _
    // Predicated region
    $region6: #{robust_block_forward.9} parent=1 // pred_check
      _
    $region7: #{robust_block_forward.9} parent=1 // pred_check_branch
      %13 = sbr.rel (0) target = $region9
    $region8: #{robust_block_forward.9} parent=1 // pred_region
      _
    $region9: #{robust_block_forward.9} parent=1 // pred_fallthru
      _
    // Predicated region
    $region10: #{robust_block_forward.9} parent=1 // pred_check
      _
    $region11: #{robust_block_forward.9} parent=1 // pred_check_branch
      %15 = sbr.rel (0) target = $region13
    $region12: #{robust_block_forward.9} parent=1 // pred_region
      _
    $region13: #{robust_block_forward.9} parent=1 // pred_fallthru
      _
    // Predicated region
    $region14: #{robust_block_forward.9} parent=1 // pred_check
      _
    $region15: #{robust_block_forward.9} parent=1 // pred_check_branch
      %17 = sbr.rel (0) target = $region17
    $region16: #{robust_block_forward.9} parent=1 // pred_region
      _
    $region17: #{robust_block_forward.9} parent=1 // pred_fallthru
      _
    %p19 = scmp.eq.s32.totalorder 0, 0
    // Predicated region
    $region18: #{robust_block_forward.9} parent=1 // pred_check
      %p20 = pneg %p19
    $region19: #{robust_block_forward.9} parent=1 // pred_check_branch
      %22 = sbr.rel (%p20) target = $region21
    $region20: #{robust_block_forward.9} parent=1 // pred_region
      %vm23 = vcmask 261120
      %24 = vst.msk [vmem:[#allocation2] sm:$0xff] %vm23, 0.0
      %25 = vst.msk [vmem:[#allocation2 + $0x8] sm:$0xff] %vm23, 0.0
    $region21: #{robust_block_forward.9} parent=1 // pred_fallthru
      _
    %v26 = vld [vmem:[#allocation2] sm:$0xff]
    %v27 = vld [vmem:[#allocation2 + $0x8] sm:$0xff]
    %v28 = vld [vmem:[%s0] sm:$0xf]
    %v29 = vld [vmem:[%s0 + $0x4] sm:$0xf]
    %v30 = vld [vmem:[%s1] sm:$0xf]
    %v31 = vld [vmem:[%s1 + $0x4] sm:$0xf]
    %v32 = vld [vmem:[%s1 + $0x8] sm:$0xf]
    %v33 = vld [vmem:[%s1 + $0xc] sm:$0xf]
    %v34 = vld [vmem:[%s1 + $0x10] sm:$0xf]
    %v35 = vld [vmem:[%s1 + $0x14] sm:$0xf]
    %v36 = vld [vmem:[%s1 + $0x18] sm:$0xf]
    %v37 = vld [vmem:[%s1 + $0x1c] sm:$0xf]
    %v38 = vld [vmem:[%s1 + $0x20] sm:$0xf]
    %v39 = vld [vmem:[%s1 + $0x24] sm:$0xf]
    %v40 = vld [vmem:[%s1 + $0x28] sm:$0xf]
    %v41 = vld [vmem:[%s1 + $0x2c] sm:$0xf]
    %v42 = vld [vmem:[%s1 + $0x30] sm:$0xf]
    %v43 = vld [vmem:[%s1 + $0x34] sm:$0xf]
    %v44 = vld [vmem:[%s1 + $0x38] sm:$0xf]
    %v45 = vld [vmem:[%s1 + $0x3c] sm:$0xf]
    %v48 = vunpack.c.l.b16 %v28
    %v49 = vunpack.c.l.b16 %v29
    %v50 = vpack.c.b16 %v49, %v48
    %v68 = vunpack.c.l.b16 %v30
    %v69 = vunpack.c.l.b16 %v31
    %v70 = vunpack.c.l.b16 %v32
    %v71 = vunpack.c.l.b16 %v33
    %v72 = vunpack.c.l.b16 %v34
    %v73 = vunpack.c.l.b16 %v35
    %v74 = vunpack.c.l.b16 %v36
    %v75 = vunpack.c.l.b16 %v37
    %v76 = vunpack.c.l.b16 %v38
    %v77 = vunpack.c.l.b16 %v39
    %v78 = vunpack.c.l.b16 %v40
    %v79 = vunpack.c.l.b16 %v41
    %v80 = vunpack.c.l.b16 %v42
    %v81 = vunpack.c.l.b16 %v43
    %v82 = vunpack.c.l.b16 %v44
    %v83 = vunpack.c.l.b16 %v45
    %v84 = vpack.c.b16 %v69, %v68
    %v85 = vpack.c.b16 %v71, %v70
    %v86 = vpack.c.b16 %v73, %v72
    %v87 = vpack.c.b16 %v75, %v74
    %v88 = vpack.c.b16 %v77, %v76
    %v89 = vpack.c.b16 %v79, %v78
    %v90 = vpack.c.b16 %v81, %v80
    %v91 = vpack.c.b16 %v83, %v82
    %100 = vmatprep.subr.bf16.mxu0 0
    %101 = vmatpush1.bf16.msra.mxu0 %v84
    %102 = vmatprep.subr.bf16.mxu0 0
    %103 = vmatpush1.bf16.msra.mxu0 %v85
    %104 = vmatprep.subr.bf16.mxu0 0
    %105 = vmatpush1.bf16.msra.mxu0 %v86
    %106 = vmatprep.subr.bf16.mxu0 0
    %107 = vmatpush1.bf16.msra.mxu0 %v87
    %108 = vmatprep.subr.bf16.mxu0 0
    %109 = vmatpush1.bf16.msra.mxu0 %v88
    %110 = vmatprep.subr.bf16.mxu0 0
    %111 = vmatpush1.bf16.msra.mxu0 %v89
    %112 = vmatprep.subr.bf16.mxu0 0
    %113 = vmatpush1.bf16.msra.mxu0 %v90
    %114 = vmatprep.subr.bf16.mxu0 0
    %115 = vmatpush1.bf16.msra.mxu0 %v91
    %116 = vmatprep.subr.bf16.mxu0 0
    %117 = vmatpush1.bf16.msra.mxu0 0
    %118 = vmatprep.subr.bf16.mxu0 0
    %119 = vmatpush1.bf16.msra.mxu0 0
    %120 = vmatprep.subr.bf16.mxu0 0
    %121 = vmatpush1.bf16.msra.mxu0 0
    %122 = vmatprep.subr.bf16.mxu0 0
    %123 = vmatpush1.bf16.msra.mxu0 0
    %124 = vmatprep.subr.bf16.mxu0 0
    %125 = vmatpush1.bf16.msra.mxu0 0
    %126 = vmatprep.subr.bf16.mxu0 0
    %127 = vmatpush1.bf16.msra.mxu0 0
    %128 = vmatprep.subr.bf16.mxu0 0
    %129 = vmatpush1.bf16.msra.mxu0 0
    %130 = vmatprep.subr.bf16.mxu0 0
    %131 = vmatpush1.bf16.msra.mxu0 0
    %132 = vmatprep.mubr.bf16.mxu0 0
    %133 = vmatmul.mubr.bf16.gmra.mrb[0].mxu0 %v50
    %v134 = vpop.f32.mrb[0].mxu0
    %v135 = vadd.f32 0.0, %v134
    %v136 = vpop.f32.mrb[0].mxu0
    %v137 = vpop.f32.mrb[0].mxu0
    %v138 = vadd.f32 0.0, %v137
    %v139 = vpop.f32.mrb[0].mxu0
    %140 = vdwg.mxu0
    %v141 = vadd.f32 %v26, %v135
    %v142 = vadd.f32 %v27, %v138
    %vm143 = vcmask 261120
    %144 = vst.msk [vmem:[#allocation2] sm:$0xff] %vm143, %v141
    %145 = vst.msk [vmem:[#allocation2 + $0x8] sm:$0xff] %vm143, %v142
    // Predicated region
    $region22: #{robust_block_forward.9} parent=1 // pred_check
      %p146 = pneg %p19
    $region23: #{robust_block_forward.9} parent=1 // pred_check_branch
      %148 = sbr.rel (%p146) target = $region25
    $region24: #{robust_block_forward.9} parent=1 // pred_region
      %v149 = vld [vmem:[#allocation2] sm:$0xff]
      %v150 = vld [vmem:[#allocation2 + $0x8] sm:$0xff]
      %v151 = vld [vmem:[%s2] sm:$0x1]
      %v153 = vlaneseq
      %v154 = vshrl.u32 %v153, 7
      %v155 = vsub.s32 0, %v154
      %v156 = vrot.slane %v151, %v155
      %v158 = vadd.f32 %v149, %v156
      %v159 = vadd.f32 %v150, %v156
      %v160 = vld [vmem:[%s3] sm:$0xff]
      %v161 = vld [vmem:[%s3 + $0x8] sm:$0xff]
      %v162 = vadd.f32 %v158, %v160
      %v163 = vadd.f32 %v159, %v161
      %164 = vst.msk [vmem:[#allocation3] sm:$0xff] %vm143, %v162
      %165 = vst.msk [vmem:[#allocation3 + $0x8] sm:$0xff] %vm143, %v163
    $region25: #{robust_block_forward.9} parent=1 // pred_fallthru
      _
    // Predicated region
    $region26: #{robust_block_forward.9} parent=1 // pred_check
      _
    $region27: #{robust_block_forward.9} parent=1 // pred_check_branch
      %167 = sbr.rel (0) target = $region29
    $region28: #{robust_block_forward.9} parent=1 // pred_region
      %s169 = ssub.s32 256, 256
      %170 = vsyncadd [#allocation4], %s169
      %s171 = sshll.u32 [#allocation3], 4
      %s172 = int_to_ptr.vmem [resolvable:$true] %s171
      %177 = dma.vmem_to_hbm [thread:$0]  %s172, 256, %s4, [#allocation4], 128, 128, 8
    $region29: #{robust_block_forward.9} parent=1 // pred_fallthru
      _
    // Predicated region
    $region30: #{robust_block_forward.9} parent=1 // pred_check
      _
    $region31: #{robust_block_forward.9} parent=1 // pred_check_branch
      %179 = sbr.rel (0) target = $region33
    $region32: #{robust_block_forward.9} parent=1 // pred_region
      %180 = dma.done [#allocation4], 256
    $region33: #{robust_block_forward.9} parent=1 // pred_fallthru
      _
    %181 = vsyncpa [#allocation4], 1

</llo_original>
